<compile_context>
chip_gen: v6e
topology: v6e:2x2x1
jax: 0.10.0
libtpu: 0.0.40
codegen_flags: <defaults>
</compile_context>

<pallas_src>
import functools
import math

import jax
import jax.numpy as jnp
from jax.experimental import pallas as pl
from jax.experimental.pallas import tpu as pltpu

_EPS = 1e-5


def _round_up(x, m):
    return ((x + m - 1) // m) * m


def _choose_tile(n_rows, lane_count, elem_bytes, target_bytes=2 * 1024 * 1024):
    """Rows per grid step: multiple of 8 sublanes, ~target_bytes per block
    (amortizes per-step pipeline overhead), and small enough that the grid
    keeps >= 2 steps when there is enough work (both v7x TensorCores busy).
    For tiny inputs use the full dim (a block dim equal to the full array dim
    is always legal)."""
    if n_rows <= 8:
        return n_rows
    cap = max(8, (target_bytes // (elem_bytes * lane_count)) // 8 * 8)
    half = _round_up((n_rows + 1) // 2, 8)
    return max(8, min(cap, half))


def _ln_packed_kernel(x_ref, s_ref, wb_ref, o_ref):
    # x_ref/o_ref: (TILE_P, 128) -- each 128-lane row holds G logical rows of
    # C channels each.  s_ref: (128, 128) block-diagonal matrix with entries
    # 1/C (group mean + broadcast back, computed on the MXU).  wb_ref: (2, 128)
    # holding [tiled weight; tiled bias] in f32.
    x = x_ref[...].astype(jnp.float32)
    s = s_ref[...]
    dot = functools.partial(jnp.dot, preferred_element_type=jnp.float32,
                            precision=jax.lax.Precision.HIGHEST)
    mu = dot(x, s)                           # per-row mean, broadcast in-group
    ex2 = dot(x * x, s)                      # per-row E[x^2]
    var = jnp.maximum(ex2 - mu * mu, 0.0)    # biased (unbiased=False) variance
    inv = jax.lax.rsqrt(var + _EPS)          # EUP
    w = wb_ref[0:1, :]
    b = wb_ref[1:2, :]
    o_ref[...] = ((x - mu) * inv * w + b).astype(o_ref.dtype)


def _ln_rows_kernel(x_ref, wb_ref, o_ref):
    # Fallback channels-last path: x_ref/o_ref: (TILE_R, C); wb_ref: (2, C).
    x = x_ref[...].astype(jnp.float32)
    mu = jnp.mean(x, axis=-1, keepdims=True)
    ex2 = jnp.mean(x * x, axis=-1, keepdims=True)
    var = jnp.maximum(ex2 - mu * mu, 0.0)
    inv = jax.lax.rsqrt(var + _EPS)
    w = wb_ref[0:1, :]
    b = wb_ref[1:2, :]
    o_ref[...] = ((x - mu) * inv * w + b).astype(o_ref.dtype)


def _layernorm_packed(x2d, weight, bias):
    rows, C = x2d.shape
    G = 128 // C
    lanes = G * C  # == 128

    if rows % G:
        # Rare path: pad < G rows so the packed reshape is legal.  This is the
        # only case that materializes an extra copy (pad + final slice).
        x2d = jnp.pad(x2d, ((0, G - rows % G), (0, 0)))
    rows_p = x2d.shape[0]
    p_total = rows_p // G
    xp = x2d.reshape(p_total, lanes)              # free, contiguous reshape

    tile_p = _choose_tile(p_total, lanes, x2d.dtype.itemsize)
    n_tiles = pl.cdiv(p_total, tile_p)            # ragged last block is OK:
    # with rows % G == 0 every packed row is wholly valid or wholly OOB, so
    # garbage never crosses lane groups; OOB output rows are discarded.

    # Block-diagonal 1/C matrix: S[i, j] = 1/C iff lanes i and j belong to the
    # same logical row (same group of C lanes).  x @ S gives per-group means
    # already broadcast back across each group (1/C is a power of two for all
    # C dividing 128, so folding it into S is numerically exact).
    grp = jnp.arange(lanes, dtype=jnp.int32) // C
    s = jnp.where(grp[:, None] == grp[None, :],
                  jnp.float32(1.0 / C), jnp.float32(0.0))

    wb = jnp.stack([jnp.tile(weight.astype(jnp.float32), G),
                    jnp.tile(bias.astype(jnp.float32), G)])   # (2, 128)

    out = pl.pallas_call(
        _ln_packed_kernel,
        out_shape=jax.ShapeDtypeStruct((p_total, lanes), x2d.dtype),
        grid_spec=pltpu.PrefetchScalarGridSpec(
            num_scalar_prefetch=0,
            grid=(n_tiles,),
            in_specs=[
                pl.BlockSpec((tile_p, lanes), lambda i: (i, 0)),
                pl.BlockSpec((lanes, lanes), lambda i: (0, 0)),
                pl.BlockSpec((2, lanes), lambda i: (0, 0)),
            ],
            out_specs=pl.BlockSpec((tile_p, lanes), lambda i: (i, 0)),
        ),
        compiler_params=pltpu.CompilerParams(
            dimension_semantics=("parallel",)),
    )(xp, s, wb)

    out = out.reshape(rows_p, C)
    return out[:rows] if rows_p != rows else out


def _layernorm_rows(x2d, weight, bias):
    rows, C = x2d.shape
    tile_r = _choose_tile(rows, C, x2d.dtype.itemsize)
    n_tiles = pl.cdiv(rows, tile_r)               # ragged last block is OK
    wb = jnp.stack([weight, bias]).astype(jnp.float32)         # (2, C)

    out = pl.pallas_call(
        _ln_rows_kernel,
        out_shape=jax.ShapeDtypeStruct((rows, C), x2d.dtype),
        grid_spec=pltpu.PrefetchScalarGridSpec(
            num_scalar_prefetch=0,
            grid=(n_tiles,),
            in_specs=[
                pl.BlockSpec((tile_r, C), lambda i: (i, 0)),
                pl.BlockSpec((2, C), lambda i: (0, 0)),
            ],
            out_specs=pl.BlockSpec((tile_r, C), lambda i: (i, 0)),
        ),
        compiler_params=pltpu.CompilerParams(
            dimension_semantics=("parallel",)),
    )(x2d, wb)
    return out


def with_bias_layernorm(x, weight, bias):
    """Pallas equivalent of WithBias_LayerNorm.forward.

    x: (..., C); weight, bias: (C,).  Normalizes over the last dimension with
    biased variance and eps=1e-5, then applies the affine weight and bias.
    """
    C = x.shape[-1]
    rows = math.prod(x.shape[:-1])
    x2d = x.reshape(rows, C)
    if 128 % C == 0:
        out2d = _layernorm_packed(x2d, weight, bias)   # lane-dense fast path
    else:
        out2d = _layernorm_rows(x2d, weight, bias)     # general fallback
    return out2d.reshape(x.shape)


def _reference(x, weight, bias):
    x32 = x.astype(jnp.float32)
    mu = jnp.mean(x32, axis=-1, keepdims=True)
    var = jnp.mean((x32 - mu) ** 2, axis=-1, keepdims=True)
    y = (x32 - mu) / jnp.sqrt(var + _EPS) * weight + bias
    return y.astype(x.dtype)


if __name__ == "__main__":
    key = jax.random.PRNGKey(0)
    kx, kw, kb, kx2, kx3 = jax.random.split(key, 5)

    # HFUR-style usage: (B, C, H, W) rearranged by to_3d to (B, H*W, C).
    B, H, W, C = 2, 8, 8, 32
    N = H * W
    x = jax.random.normal(kx, (B, N, C), dtype=jnp.float32)
    weight = jnp.ones((C,), jnp.float32) + 0.01 * jax.random.normal(kw, (C,))
    bias = jnp.zeros((C,), jnp.float32) + 0.01 * jax.random.normal(kb, (C,))

    out = jax.block_until_ready(with_bias_layernorm(x, weight, bias))
    ref = _reference(x, weight, bias)
    assert out.shape == x.shape
    assert jnp.allclose(out, ref, atol=2e-5, rtol=2e-5), "packed path mismatch"

    # Ragged packed path: packed-row count not a multiple of the row tile
    # (exercises the cdiv grid with a partial final block, no host-side pad).
    x3 = jax.random.normal(kx3, (1, 36, C), dtype=jnp.float32)
    out3 = jax.block_until_ready(with_bias_layernorm(x3, weight, bias))
    ref3 = _reference(x3, weight, bias)
    assert jnp.allclose(out3, ref3, atol=2e-5, rtol=2e-5), "ragged packed mismatch"

    # Fallback path: C that does not divide 128, and a ragged row count.
    C2, N2 = 48, 30
    x2 = jax.random.normal(kx2, (B, N2, C2), dtype=jnp.float32)
    w2 = jnp.ones((C2,), jnp.float32)
    b2 = jnp.zeros((C2,), jnp.float32)
    out2 = jax.block_until_ready(with_bias_layernorm(x2, w2, b2))
    ref2 = _reference(x2, w2, b2)
    assert jnp.allclose(out2, ref2, atol=2e-5, rtol=2e-5), "fallback mismatch"

    print("KERNEL_OK")
</pallas_src>

<mosaic_0001>
module attributes {stable_mosaic.version = 11 : i64} {
  func.func @_ln_packed_kernel(%arg0: i32, %arg1: memref<16x128xf32, #tpu.memory_space<vmem>>, %arg2: memref<128x128xf32, #tpu.memory_space<vmem>>, %arg3: memref<2x128xf32, #tpu.memory_space<vmem>>, %arg4: memref<16x128xf32, #tpu.memory_space<vmem>>) attributes {dimension_semantics = [#tpu.dimension_semantics<parallel>], iteration_bounds = array<i64: 2>, scalar_prefetch = 0 : i64, scratch_operands = 0 : i64, tpu.core_type = #tpu.core_type<tc>, window_params = [{transform_indices = @transform_0, window_bounds = array<i64: 16, 128>}, {pipeline_mode = #tpu.pipeline_mode<synchronous>, transform_indices = @transform_1, window_bounds = array<i64: 128, 128>}, {pipeline_mode = #tpu.pipeline_mode<synchronous>, transform_indices = @transform_2, window_bounds = array<i64: 2, 128>}, {transform_indices = @transform_3, window_bounds = array<i64: 16, 128>}]} {
    %c0 = arith.constant 0 : index
    %c0_0 = arith.constant 0 : index
    %0 = vector.load %arg1[%c0, %c0_0] : memref<16x128xf32, #tpu.memory_space<vmem>>, vector<16x128xf32>
    %c0_1 = arith.constant 0 : index
    %c0_2 = arith.constant 0 : index
    %1 = vector.load %arg2[%c0_1, %c0_2] : memref<128x128xf32, #tpu.memory_space<vmem>>, vector<128x128xf32>
    %cst = arith.constant dense<0.000000e+00> : vector<16x128xf32>
    %2 = tpu.matmul %0, %1, %cst {dimension_numbers = #tpu.dot_dimension_numbers<[1], [0], [0], [1], [0, 0, 1, 1], [], []>, precision = #tpu.contract_precision<fp32>} : vector<16x128xf32>, vector<128x128xf32>, vector<16x128xf32> -> vector<16x128xf32>
    %3 = arith.mulf %0, %0 : vector<16x128xf32>
    %cst_3 = arith.constant dense<0.000000e+00> : vector<16x128xf32>
    %4 = tpu.matmul %3, %1, %cst_3 {dimension_numbers = #tpu.dot_dimension_numbers<[1], [0], [0], [1], [0, 0, 1, 1], [], []>, precision = #tpu.contract_precision<fp32>} : vector<16x128xf32>, vector<128x128xf32>, vector<16x128xf32> -> vector<16x128xf32>
    %5 = arith.mulf %2, %2 : vector<16x128xf32>
    %6 = arith.subf %4, %5 : vector<16x128xf32>
    %cst_4 = arith.constant 0.000000e+00 : f32
    %7 = vector.broadcast %cst_4 : f32 to vector<16x128xf32>
    %8 = arith.maximumf %6, %7 : vector<16x128xf32>
    %cst_5 = arith.constant 9.99999974E-6 : f32
    %9 = vector.broadcast %cst_5 : f32 to vector<16x128xf32>
    %10 = arith.addf %8, %9 : vector<16x128xf32>
    %11 = math.rsqrt %10 : vector<16x128xf32>
    %c0_6 = arith.constant 0 : index
    %c0_7 = arith.constant 0 : index
    %12 = vector.load %arg3[%c0_6, %c0_7] : memref<2x128xf32, #tpu.memory_space<vmem>>, vector<1x128xf32>
    %c1 = arith.constant 1 : index
    %c0_8 = arith.constant 0 : index
    %13 = vector.load %arg3[%c1, %c0_8] : memref<2x128xf32, #tpu.memory_space<vmem>>, vector<1x128xf32>
    %14 = arith.subf %0, %2 : vector<16x128xf32>
    %15 = arith.mulf %14, %11 : vector<16x128xf32>
    %16 = vector.broadcast %12 : vector<1x128xf32> to vector<16x128xf32>
    %17 = arith.mulf %15, %16 : vector<16x128xf32>
    %18 = vector.broadcast %13 : vector<1x128xf32> to vector<16x128xf32>
    %19 = arith.addf %17, %18 : vector<16x128xf32>
    %c0_9 = arith.constant 0 : index
    %c0_10 = arith.constant 0 : index
    %20 = vector.load %arg4[%c0_9, %c0_10] : memref<16x128xf32, #tpu.memory_space<vmem>>, vector<16x128xf32>
    tpu.vector_store %arg4[%c0_9, %c0_10], %19 {strides = array<i32>} : memref<16x128xf32, #tpu.memory_space<vmem>>, vector<16x128xf32>,
    return
  }
  func.func @transform_0(%arg0: i32) -> (i32, i32) {
    %c0_i32 = arith.constant 0 : i32
    %c0_i32_0 = arith.constant 0 : i32
    return %arg0, %c0_i32 : i32, i32
  }
  func.func @transform_1(%arg0: i32) -> (i32, i32) {
    %c0_i32 = arith.constant 0 : i32
    %c0_i32_0 = arith.constant 0 : i32
    %c0_i32_1 = arith.constant 0 : i32
    return %c0_i32, %c0_i32_0 : i32, i32
  }
  func.func @transform_2(%arg0: i32) -> (i32, i32) {
    %c0_i32 = arith.constant 0 : i32
    %c0_i32_0 = arith.constant 0 : i32
    %c0_i32_1 = arith.constant 0 : i32
    return %c0_i32, %c0_i32_0 : i32, i32
  }
  func.func @transform_3(%arg0: i32) -> (i32, i32) {
    %c0_i32 = arith.constant 0 : i32
    %c0_i32_0 = arith.constant 0 : i32
    return %arg0, %c0_i32 : i32, i32
  }
}

</mosaic_0001>

<llo_original>
// kernel: tpu_custom_call.1
$region0: #{tpu_custom_call.1}
  #allocation0 [shape = 'u32[]', space=smem, size = 0x4, offset = 0x4, fixed_abs, tag = 'smem constant byte address 0x4 - core index']
  #allocation1 [shape = 'u32[144,128]{1,0:T(1,128)}', space=vmem, size = 0x12000, scoped, tag = 'internal scratch']
  %s0 = inlined_call_operand.hbm [shape: f32[32,128], index: 0, kind: input, shape index: {}]
  %s1 = inlined_call_operand.hbm [shape: f32[128,128], index: 1, kind: input, shape index: {}]
  %s2 = inlined_call_operand.vmem [shape: f32[2,128], index: 2, kind: input, shape index: {}]
  %s3 = inlined_call_operand.hbm [shape: f32[32,128], index: 3, kind: output, shape index: {}]
  %s4 = sld [smem:[#allocation0]]
  $region53: #{tpu_custom_call.1} parent=0
    _
  %s6 = ssub.s32 1, %s4
  %s7 = scalar_select 0, %s6, %s4
  $region1: #{tpu_custom_call.1} parent=0
    #allocation2 [shape = 'u8[16384]{0}', space=vmem, size = 0x4000, scoped, tag = 'input window, operand 0']
    #allocation3 [shape = 's32[2]{0}', space=sflag, size = 0x8, scoped, tag = 'scoped memory for tpu_custom_call.1']
    #allocation4 [shape = 's32[2]{0}', space=sflag, size = 0x8, scoped, tag = 'scoped memory for tpu_custom_call.1']
    #allocation5 [shape = 'u8[65536]{0}', space=vmem, size = 0x10000, scoped, tag = 'input window, operand 1, single buffered']
    #allocation6 [shape = 's32[1]{0}', space=sflag, size = 0x4, scoped, tag = 'scoped memory for tpu_custom_call.1']
    #allocation7 [shape = 'u8[16384]{0}', space=vmem, size = 0x4000, scoped, tag = 'output window, operand 0']
    %8 = vsyncpa [#allocation3], 0
    %s9 = scalar_lea.sflag [#allocation3], 1
    %10 = vsyncpa %s9, 0
    %11 = vsyncpa [#allocation6], 0
    %12 = vsyncpa [#allocation4], 0
    %s13 = scalar_lea.sflag [#allocation4], 1
    %14 = vsyncpa %s13, 0
    loop: start=0, step=1, limit=4
    $region2: #{tpu_custom_call.1} parent=1 // loop_pre_header
      _
    $region3: #{tpu_custom_call.1} parent=1 // loop_header
      %s16 = sphi 0, %s20
      %p17 = scmp.ge.s32.totalorder %s16, 4
      %s26 = sphi 0, %s28
      %s29 = sphi 0, %s26
      %s30 = sphi 0, %s29
      %s46 = sphi 0, %s30
      %s50 = sphi 0, %s50
      %s52 = sphi 0, %s50
      %s53 = sphi 0, %s52
      %s67 = sphi 0, %s53
      %s71 = sphi 0, %s71
      %s73 = sphi 0, %s71
      %s74 = sphi 0, %s73
      %s88 = sphi 0, %s74
      %s94 = sphi 0, %s96
      %s97 = sphi 0, %s94
      %s98 = sphi 0, %s97
      %s114 = sphi 0, %s98
    $region4: #{tpu_custom_call.1} parent=1 // loop_header_branch
      %19 = sbr.rel (%p17) target = $region8
    $region5: #{tpu_custom_call.1} parent=1 // loop_body
      %s21 = ssub.s32 %s16, 1
      %s22 = ssub.s32 %s16, 2
      %s23 = sadd.s32 %s16, 1
      %s24 = ssub.s32 %s16, %s23
      %p25 = scmp.eq.s32.totalorder %s24, 0
      %s27 = sadd.s32 %s26, 1
      %s28 = scalar_select %p25, %s26, %s27
      %p31 = pneg %p25
      %p32 = scmp.eq.s32.totalorder %s16, 1
      %p33 = por %p31, %p32
      %p34 = scmp.ne.s32.totalorder %s26, %s29
      %p35 = scmp.eq.s32.totalorder %s16, 0
      %p36 = por %p34, %p35
      %p37 = scmp.ne.s32.totalorder %s26, %s29
      %p38 = scmp.eq.s32.totalorder %s21, 1
      %p39 = por %p37, %p38
      %p40 = scmp.ne.s32.totalorder %s29, %s30
      %p41 = scmp.eq.s32.totalorder %s21, 0
      %p42 = por %p40, %p41
      %p43 = scmp.ne.s32.totalorder %s29, %s30
      %p44 = scmp.eq.s32.totalorder %s22, 1
      %p45 = por %p43, %p44
      %p47 = scmp.ne.s32.totalorder %s30, %s46
      %p48 = scmp.eq.s32.totalorder %s22, 0
      %p49 = por %p47, %p48
      %s51 = sadd.s32 %s50, 1
      %p54 = scmp.eq.s32.totalorder %s16, 1
      %p55 = scmp.ne.s32.totalorder %s50, %s52
      %p56 = scmp.eq.s32.totalorder %s16, 0
      %p57 = por %p55, %p56
      %p58 = scmp.ne.s32.totalorder %s50, %s52
      %p59 = scmp.eq.s32.totalorder %s21, 1
      %p60 = por %p58, %p59
      %p61 = scmp.ne.s32.totalorder %s52, %s53
      %p62 = scmp.eq.s32.totalorder %s21, 0
      %p63 = por %p61, %p62
      %p64 = scmp.ne.s32.totalorder %s52, %s53
      %p65 = scmp.eq.s32.totalorder %s22, 1
      %p66 = por %p64, %p65
      %p68 = scmp.ne.s32.totalorder %s53, %s67
      %p69 = scmp.eq.s32.totalorder %s22, 0
      %p70 = por %p68, %p69
      %s72 = sadd.s32 %s71, 1
      %p75 = scmp.eq.s32.totalorder %s16, 1
      %p76 = scmp.ne.s32.totalorder %s71, %s73
      %p77 = scmp.eq.s32.totalorder %s16, 0
      %p78 = por %p76, %p77
      %p79 = scmp.ne.s32.totalorder %s71, %s73
      %p80 = scmp.eq.s32.totalorder %s21, 1
      %p81 = por %p79, %p80
      %p82 = scmp.ne.s32.totalorder %s73, %s74
      %p83 = scmp.eq.s32.totalorder %s21, 0
      %p84 = por %p82, %p83
      %p85 = scmp.ne.s32.totalorder %s73, %s74
      %p86 = scmp.eq.s32.totalorder %s22, 1
      %p87 = por %p85, %p86
      %p89 = scmp.ne.s32.totalorder %s74, %s88
      %p90 = scmp.eq.s32.totalorder %s22, 0
      %p91 = por %p89, %p90
      %s92 = ssub.s32 %s16, %s23
      %p93 = scmp.eq.s32.totalorder %s92, 0
      %s95 = sadd.s32 %s94, 1
      %s96 = scalar_select %p93, %s94, %s95
      %p99 = pneg %p93
      %p100 = scmp.eq.s32.totalorder %s16, 1
      %p101 = por %p99, %p100
      %p102 = scmp.ne.s32.totalorder %s94, %s97
      %p103 = scmp.eq.s32.totalorder %s16, 0
      %p104 = por %p102, %p103
      %p105 = scmp.ne.s32.totalorder %s94, %s97
      %p106 = scmp.eq.s32.totalorder %s21, 1
      %p107 = por %p105, %p106
      %p108 = scmp.ne.s32.totalorder %s97, %s98
      %p109 = scmp.eq.s32.totalorder %s21, 0
      %p110 = por %p108, %p109
      %p111 = scmp.ne.s32.totalorder %s97, %s98
      %p112 = scmp.eq.s32.totalorder %s22, 1
      %p113 = por %p111, %p112
      %p115 = scmp.ne.s32.totalorder %s98, %s114
      %p116 = scmp.eq.s32.totalorder %s22, 0
      %p117 = por %p115, %p116
      %p118 = scmp.le.s32.totalorder 1, %s16
      %p119 = scmp.lt.s32.totalorder %s16, 3
      %p120 = pnand %p118, %p119
      %p121 = pneg %p120
      // Predicated region
      $region9: #{tpu_custom_call.1} parent=5 // pred_check
        _
      $region10: #{tpu_custom_call.1} parent=5 // pred_check_branch
        %123 = sbr.rel (%p120) target = $region12
      $region11: #{tpu_custom_call.1} parent=5 // pred_region
        %s124 = ssub.s32 %s16, 1
        // Predicated region
        $region13: #{tpu_custom_call.1} parent=11 // pred_check
          %p125 = pneg %p63
        $region14: #{tpu_custom_call.1} parent=11 // pred_check_branch
          %127 = sbr.rel (%p125) target = $region16
        $region15: #{tpu_custom_call.1} parent=11 // pred_region
          %s129 = ssub.s32 2048, 2048
          %130 = vsyncadd [#allocation6], %s129
          %s131 = sshll.u32 [#allocation5], 4
          %s132 = int_to_ptr.vmem [resolvable:$true] %s131
          %137 = dma.hbm_to_vmem [thread:$0]  %s1, 2048, %s132, [#allocation6], 128, 128, 8
        $region16: #{tpu_custom_call.1} parent=11 // pred_fallthru
          _
        // Predicated region
        $region17: #{tpu_custom_call.1} parent=11 // pred_check
          %p138 = pneg %p84
        $region18: #{tpu_custom_call.1} parent=11 // pred_check_branch
          %140 = sbr.rel (%p138) target = $region20
        $region19: #{tpu_custom_call.1} parent=11 // pred_region
          _
        $region20: #{tpu_custom_call.1} parent=11 // pred_fallthru
          _
      $region12: #{tpu_custom_call.1} parent=5 // pred_fallthru
        _
      %p141 = scmp.lt.s32.totalorder %s16, 2
      // Predicated region
      $region21: #{tpu_custom_call.1} parent=5 // pred_check
        %p142 = pneg %p141
      $region22: #{tpu_custom_call.1} parent=5 // pred_check_branch
        %144 = sbr.rel (%p142) target = $region24
      $region23: #{tpu_custom_call.1} parent=5 // pred_region
        // Predicated region
        $region25: #{tpu_custom_call.1} parent=23 // pred_check
          %p145 = pneg %p36
        $region26: #{tpu_custom_call.1} parent=23 // pred_check_branch
          %147 = sbr.rel (%p145) target = $region28
        $region27: #{tpu_custom_call.1} parent=23 // pred_region
          %s148 = sand.u32 %s26, 1
          %s149 = scalar_lea.sflag [#allocation3], %s148
          %s150 = sand.u32 %s26, 1
          %s151 = smul.addr %s150, 16
          %s152 = scalar_lea.vmem [#allocation2], %s151
          %s153 = smul.u32 2, %s16
          %s155 = ssub.s32 256, 256
          %156 = vsyncadd %s149, %s155
          %s157 = smul.addr %s153, 128
          %s158 = scalar_lea.hbm %s0, %s157
          %s159 = sshll.u32 %s152, 4
          %s160 = int_to_ptr.vmem [resolvable:$true] %s159
          %165 = dma.hbm_to_vmem [thread:$0]  %s158, 256, %s160, %s149, 128, 128, 8
        $region28: #{tpu_custom_call.1} parent=23 // pred_fallthru
          _
      $region24: #{tpu_custom_call.1} parent=5 // pred_fallthru
        _
      %p166 = scmp.le.s32.totalorder 1, %s16
      %p167 = scmp.lt.s32.totalorder %s16, 3
      %p168 = pnand %p166, %p167
      %p169 = pneg %p168
      // Predicated region
      $region29: #{tpu_custom_call.1} parent=5 // pred_check
        _
      $region30: #{tpu_custom_call.1} parent=5 // pred_check_branch
        %171 = sbr.rel (%p168) target = $region32
      $region31: #{tpu_custom_call.1} parent=5 // pred_region
        %s172 = ssub.s32 %s16, 1
        %s173 = sand.u32 %s29, 1
        %s174 = scalar_lea.sflag [#allocation3], %s173
        %s175 = sand.u32 %s29, 1
        %s176 = smul.addr %s175, 16
        %s177 = scalar_lea.vmem [#allocation2], %s176
        // Predicated region
        $region33: #{tpu_custom_call.1} parent=31 // pred_check
          %p178 = pneg %p42
        $region34: #{tpu_custom_call.1} parent=31 // pred_check_branch
          %180 = sbr.rel (%p178) target = $region36
        $region35: #{tpu_custom_call.1} parent=31 // pred_region
          %181 = dma.done %s174, 256
        $region36: #{tpu_custom_call.1} parent=31 // pred_fallthru
          _
        // Predicated region
        $region37: #{tpu_custom_call.1} parent=31 // pred_check
          %p182 = pneg %p63
        $region38: #{tpu_custom_call.1} parent=31 // pred_check_branch
          %184 = sbr.rel (%p182) target = $region40
        $region39: #{tpu_custom_call.1} parent=31 // pred_region
          %185 = dma.done [#allocation6], 2048
        $region40: #{tpu_custom_call.1} parent=31 // pred_fallthru
          _
        %s186 = sand.u32 %s29, 1
        %s187 = scalar_lea.sflag [#allocation3], %s186
        %s188 = sand.u32 %s29, 1
        %s189 = smul.addr %s188, 16
        %s190 = scalar_lea.vmem [#allocation2], %s189
        %p191 = pneg %p42
        %p192 = pneg %p39
        %p193 = pneg %p63
        %p194 = pneg %p60
        %p195 = pneg %p84
        %p196 = pneg %p81
        %p197 = pneg %p110
        %p198 = pneg %p107
        %s199 = sand.u32 %s97, 1
        %s200 = scalar_lea.sflag [#allocation4], %s199
        %s201 = sand.u32 %s97, 1
        %s202 = smul.addr %s201, 16
        %s203 = scalar_lea.vmem [#allocation7], %s202
        %s204 = smul.u32 2, %s21
        %s205 = smul.u32 2, %s21
        %v206 = vld [vmem:[%s177] sm:$0xff]
        %v207 = vld [vmem:[%s177 + $0x8] sm:$0xff]
        %v208 = vld [vmem:[#allocation5] sm:$0xff]
        %v209 = vld [vmem:[#allocation5 + $0x8] sm:$0xff]
        %v210 = vld [vmem:[#allocation5 + $0x10] sm:$0xff]
        %v211 = vld [vmem:[#allocation5 + $0x18] sm:$0xff]
        %v212 = vld [vmem:[#allocation5 + $0x20] sm:$0xff]
        %v213 = vld [vmem:[#allocation5 + $0x28] sm:$0xff]
        %v214 = vld [vmem:[#allocation5 + $0x30] sm:$0xff]
        %v215 = vld [vmem:[#allocation5 + $0x38] sm:$0xff]
        %v216 = vld [vmem:[#allocation5 + $0x40] sm:$0xff]
        %v217 = vld [vmem:[#allocation5 + $0x48] sm:$0xff]
        %v218 = vld [vmem:[#allocation5 + $0x50] sm:$0xff]
        %v219 = vld [vmem:[#allocation5 + $0x58] sm:$0xff]
        %v220 = vld [vmem:[#allocation5 + $0x60] sm:$0xff]
        %v221 = vld [vmem:[#allocation5 + $0x68] sm:$0xff]
        %v222 = vld [vmem:[#allocation5 + $0x70] sm:$0xff]
        %v223 = vld [vmem:[#allocation5 + $0x78] sm:$0xff]
        %224 = vmatprep.subr.mxu0 0.0
        %v225 = vand.u32 %v223, 4294901760
        %226 = vmatpush1.msra.mxu0 %v225
        %227 = vmatprep.subr.mxu0 0.0
        %v228 = vand.u32 %v222, 4294901760
        %229 = vmatpush1.msra.mxu0 %v228
        %230 = vmatprep.subr.mxu0 0.0
        %v231 = vand.u32 %v221, 4294901760
        %232 = vmatpush1.msra.mxu0 %v231
        %233 = vmatprep.subr.mxu0 0.0
        %v234 = vand.u32 %v220, 4294901760
        %235 = vmatpush1.msra.mxu0 %v234
        %236 = vmatprep.subr.mxu0 0.0
        %v237 = vand.u32 %v219, 4294901760
        %238 = vmatpush1.msra.mxu0 %v237
        %239 = vmatprep.subr.mxu0 0.0
        %v240 = vand.u32 %v218, 4294901760
        %241 = vmatpush1.msra.mxu0 %v240
        %242 = vmatprep.subr.mxu0 0.0
        %v243 = vand.u32 %v217, 4294901760
        %244 = vmatpush1.msra.mxu0 %v243
        %245 = vmatprep.subr.mxu0 0.0
        %v246 = vand.u32 %v216, 4294901760
        %247 = vmatpush1.msra.mxu0 %v246
        %248 = vmatprep.subr.mxu0 0.0
        %v249 = vand.u32 %v215, 4294901760
        %250 = vmatpush1.msra.mxu0 %v249
        %251 = vmatprep.subr.mxu0 0.0
        %v252 = vand.u32 %v214, 4294901760
        %253 = vmatpush1.msra.mxu0 %v252
        %254 = vmatprep.subr.mxu0 0.0
        %v255 = vand.u32 %v213, 4294901760
        %256 = vmatpush1.msra.mxu0 %v255
        %257 = vmatprep.subr.mxu0 0.0
        %v258 = vand.u32 %v212, 4294901760
        %259 = vmatpush1.msra.mxu0 %v258
        %260 = vmatprep.subr.mxu0 0.0
        %v261 = vand.u32 %v211, 4294901760
        %262 = vmatpush1.msra.mxu0 %v261
        %263 = vmatprep.subr.mxu0 0.0
        %v264 = vand.u32 %v210, 4294901760
        %265 = vmatpush1.msra.mxu0 %v264
        %266 = vmatprep.subr.mxu0 0.0
        %v267 = vand.u32 %v209, 4294901760
        %268 = vmatpush1.msra.mxu0 %v267
        %269 = vmatprep.subr.mxu0 0.0
        %v270 = vand.u32 %v208, 4294901760
        %271 = vmatpush1.msra.mxu0 %v270
        %272 = vmatprep.subr.mxu0 0.0
        %273 = vmatpush2.msra.mxu0 0.0
        %274 = vmatprep.subr.mxu0 0.0
        %275 = vmatpush2.msra.mxu0 0.0
        %276 = vmatprep.subr.mxu0 0.0
        %277 = vmatpush2.msra.mxu0 0.0
        %278 = vmatprep.subr.mxu0 0.0
        %279 = vmatpush2.msra.mxu0 0.0
        %280 = vmatprep.subr.mxu0 0.0
        %281 = vmatpush2.msra.mxu0 0.0
        %282 = vmatprep.subr.mxu0 0.0
        %283 = vmatpush2.msra.mxu0 0.0
        %284 = vmatprep.subr.mxu0 0.0
        %285 = vmatpush2.msra.mxu0 0.0
        %286 = vmatprep.subr.mxu0 0.0
        %287 = vmatpush2.msra.mxu0 0.0
        %288 = vmatprep.subr.mxu0 0.0
        %289 = vmatpush2.msra.mxu0 0.0
        %290 = vmatprep.subr.mxu0 0.0
        %291 = vmatpush2.msra.mxu0 0.0
        %292 = vmatprep.subr.mxu0 0.0
        %293 = vmatpush2.msra.mxu0 0.0
        %294 = vmatprep.subr.mxu0 0.0
        %295 = vmatpush2.msra.mxu0 0.0
        %296 = vmatprep.subr.mxu0 0.0
        %297 = vmatpush2.msra.mxu0 0.0
        %298 = vmatprep.subr.mxu0 0.0
        %299 = vmatpush2.msra.mxu0 0.0
        %300 = vmatprep.subr.mxu0 0.0
        %301 = vmatpush2.msra.mxu0 0.0
        %302 = vmatprep.subr.mxu0 0.0
        %303 = vmatpush2.msra.mxu0 0.0
        %304 = vmatprep.mubr.f32.mxu0 0.0
        %v305 = vand.u32 %v206, 4294901760
        %v306 = vsub.f32 %v206, %v305
        %v307 = vand.u32 %v306, 4294901760
        %v308 = vsub.f32 %v306, %v307
        %v309 = vand.u32 %v308, 4294901760
        %310 = vmatmul.mubr.f32.gmra.mxu0 %v309
        %v311 = vpop.f32.mrf.mxu0
        %v312 = vadd.f32 0.0, %v311
        %v313 = vpop.f32.mrf.mxu0
        %314 = vmatprep.mubr.f32.mxu0 0.0
        %v315 = vand.u32 %v207, 4294901760
        %v316 = vsub.f32 %v207, %v315
        %v317 = vand.u32 %v316, 4294901760
        %v318 = vsub.f32 %v316, %v317
        %v319 = vand.u32 %v318, 4294901760
        %320 = vmatmul.mubr.f32.gmra.mxu0 %v319
        %v321 = vpop.f32.mrf.mxu0
        %v322 = vadd.f32 0.0, %v321
        %v323 = vpop.f32.mrf.mxu0
        %324 = vdwg.mxu0
        %325 = vmatprep.subr.mxu0 0.0
        %v326 = vand.u32 %v223, 4294901760
        %v327 = vsub.f32 %v223, %v326
        %v328 = vand.u32 %v327, 4294901760
        %v329 = vsub.f32 %v327, %v328
        %v330 = vand.u32 %v329, 4294901760
        %331 = vmatpush1.msra.mxu0 %v330
        %332 = vmatprep.subr.mxu0 0.0
        %v333 = vand.u32 %v222, 4294901760
        %v334 = vsub.f32 %v222, %v333
        %v335 = vand.u32 %v334, 4294901760
        %v336 = vsub.f32 %v334, %v335
        %v337 = vand.u32 %v336, 4294901760
        %338 = vmatpush1.msra.mxu0 %v337
        %339 = vmatprep.subr.mxu0 0.0
        %v340 = vand.u32 %v221, 4294901760
        %v341 = vsub.f32 %v221, %v340
        %v342 = vand.u32 %v341, 4294901760
        %v343 = vsub.f32 %v341, %v342
        %v344 = vand.u32 %v343, 4294901760
        %345 = vmatpush1.msra.mxu0 %v344
        %346 = vmatprep.subr.mxu0 0.0
        %v347 = vand.u32 %v220, 4294901760
        %v348 = vsub.f32 %v220, %v347
        %v349 = vand.u32 %v348, 4294901760
        %v350 = vsub.f32 %v348, %v349
        %v351 = vand.u32 %v350, 4294901760
        %352 = vmatpush1.msra.mxu0 %v351
        %353 = vmatprep.subr.mxu0 0.0
        %v354 = vand.u32 %v219, 4294901760
        %v355 = vsub.f32 %v219, %v354
        %v356 = vand.u32 %v355, 4294901760
        %v357 = vsub.f32 %v355, %v356
        %v358 = vand.u32 %v357, 4294901760
        %359 = vmatpush1.msra.mxu0 %v358
        %360 = vmatprep.subr.mxu0 0.0
        %v361 = vand.u32 %v218, 4294901760
        %v362 = vsub.f32 %v218, %v361
        %v363 = vand.u32 %v362, 4294901760
        %v364 = vsub.f32 %v362, %v363
        %v365 = vand.u32 %v364, 4294901760
        %366 = vmatpush1.msra.mxu0 %v365
        %367 = vmatprep.subr.mxu0 0.0
        %v368 = vand.u32 %v217, 4294901760
        %v369 = vsub.f32 %v217, %v368
        %v370 = vand.u32 %v369, 4294901760
        %v371 = vsub.f32 %v369, %v370
        %v372 = vand.u32 %v371, 4294901760
        %373 = vmatpush1.msra.mxu0 %v372
        %374 = vmatprep.subr.mxu0 0.0
        %v375 = vand.u32 %v216, 4294901760
        %v376 = vsub.f32 %v216, %v375
        %v377 = vand.u32 %v376, 4294901760
        %v378 = vsub.f32 %v376, %v377
        %v379 = vand.u32 %v378, 4294901760
        %380 = vmatpush1.msra.mxu0 %v379
        %381 = vmatprep.subr.mxu0 0.0
        %v382 = vand.u32 %v215, 4294901760
        %v383 = vsub.f32 %v215, %v382
        %v384 = vand.u32 %v383, 4294901760
        %v385 = vsub.f32 %v383, %v384
        %v386 = vand.u32 %v385, 4294901760
        %387 = vmatpush1.msra.mxu0 %v386
        %388 = vmatprep.subr.mxu0 0.0
        %v389 = vand.u32 %v214, 4294901760
        %v390 = vsub.f32 %v214, %v389
        %v391 = vand.u32 %v390, 4294901760
        %v392 = vsub.f32 %v390, %v391
        %v393 = vand.u32 %v392, 4294901760
        %394 = vmatpush1.msra.mxu0 %v393
        %395 = vmatprep.subr.mxu0 0.0
        %v396 = vand.u32 %v213, 4294901760
        %v397 = vsub.f32 %v213, %v396
        %v398 = vand.u32 %v397, 4294901760
        %v399 = vsub.f32 %v397, %v398
        %v400 = vand.u32 %v399, 4294901760
        %401 = vmatpush1.msra.mxu0 %v400
        %402 = vmatprep.subr.mxu0 0.0
        %v403 = vand.u32 %v212, 4294901760
        %v404 = vsub.f32 %v212, %v403
        %v405 = vand.u32 %v404, 4294901760
        %v406 = vsub.f32 %v404, %v405
        %v407 = vand.u32 %v406, 4294901760
        %408 = vmatpush1.msra.mxu0 %v407
        %409 = vmatprep.subr.mxu0 0.0
        %v410 = vand.u32 %v211, 4294901760
        %v411 = vsub.f32 %v211, %v410
        %v412 = vand.u32 %v411, 4294901760
        %v413 = vsub.f32 %v411, %v412
        %v414 = vand.u32 %v413, 4294901760
        %415 = vmatpush1.msra.mxu0 %v414
        %416 = vmatprep.subr.mxu0 0.0
        %v417 = vand.u32 %v210, 4294901760
        %v418 = vsub.f32 %v210, %v417
        %v419 = vand.u32 %v418, 4294901760
        %v420 = vsub.f32 %v418, %v419
        %v421 = vand.u32 %v420, 4294901760
        %422 = vmatpush1.msra.mxu0 %v421
        %423 = vmatprep.subr.mxu0 0.0
        %v424 = vand.u32 %v209, 4294901760
        %v425 = vsub.f32 %v209, %v424
        %v426 = vand.u32 %v425, 4294901760
        %v427 = vsub.f32 %v425, %v426
        %v428 = vand.u32 %v427, 4294901760
        %429 = vmatpush1.msra.mxu0 %v428
        %430 = vmatprep.subr.mxu0 0.0
        %v431 = vand.u32 %v208, 4294901760
        %v432 = vsub.f32 %v208, %v431
        %v433 = vand.u32 %v432, 4294901760
        %v434 = vsub.f32 %v432, %v433
        %v435 = vand.u32 %v434, 4294901760
        %436 = vmatpush1.msra.mxu0 %v435
        %437 = vmatprep.subr.mxu0 0.0
        %438 = vmatpush2.msra.mxu0 0.0
        %439 = vmatprep.subr.mxu0 0.0
        %440 = vmatpush2.msra.mxu0 0.0
        %441 = vmatprep.subr.mxu0 0.0
        %442 = vmatpush2.msra.mxu0 0.0
        %443 = vmatprep.subr.mxu0 0.0
        %444 = vmatpush2.msra.mxu0 0.0
        %445 = vmatprep.subr.mxu0 0.0
        %446 = vmatpush2.msra.mxu0 0.0
        %447 = vmatprep.subr.mxu0 0.0
        %448 = vmatpush2.msra.mxu0 0.0
        %449 = vmatprep.subr.mxu0 0.0
        %450 = vmatpush2.msra.mxu0 0.0
        %451 = vmatprep.subr.mxu0 0.0
        %452 = vmatpush2.msra.mxu0 0.0
        %453 = vmatprep.subr.mxu0 0.0
        %454 = vmatpush2.msra.mxu0 0.0
        %455 = vmatprep.subr.mxu0 0.0
        %456 = vmatpush2.msra.mxu0 0.0
        %457 = vmatprep.subr.mxu0 0.0
        %458 = vmatpush2.msra.mxu0 0.0
        %459 = vmatprep.subr.mxu0 0.0
        %460 = vmatpush2.msra.mxu0 0.0
        %461 = vmatprep.subr.mxu0 0.0
        %462 = vmatpush2.msra.mxu0 0.0
        %463 = vmatprep.subr.mxu0 0.0
        %464 = vmatpush2.msra.mxu0 0.0
        %465 = vmatprep.subr.mxu0 0.0
        %466 = vmatpush2.msra.mxu0 0.0
        %467 = vmatprep.subr.mxu0 0.0
        %468 = vmatpush2.msra.mxu0 0.0
        %469 = vmatprep.mubr.f32.mxu0 0.0
        %v470 = vand.u32 %v206, 4294901760
        %471 = vmatmul.mubr.f32.gmra.mxu0 %v470
        %v472 = vpop.f32.mrf.mxu0
        %v473 = vadd.f32 %v312, %v472
        %v474 = vpop.f32.mrf.mxu0
        %475 = vmatprep.mubr.f32.mxu0 0.0
        %v476 = vand.u32 %v207, 4294901760
        %477 = vmatmul.mubr.f32.gmra.mxu0 %v476
        %v478 = vpop.f32.mrf.mxu0
        %v479 = vadd.f32 %v322, %v478
        %v480 = vpop.f32.mrf.mxu0
        %481 = vdwg.mxu0
        %482 = vmatprep.subr.mxu0 0.0
        %v483 = vand.u32 %v223, 4294901760
        %v484 = vsub.f32 %v223, %v483
        %485 = vmatpush1.msra.mxu0 %v484
        %486 = vmatprep.subr.mxu0 0.0
        %v487 = vand.u32 %v222, 4294901760
        %v488 = vsub.f32 %v222, %v487
        %489 = vmatpush1.msra.mxu0 %v488
        %490 = vmatprep.subr.mxu0 0.0
        %v491 = vand.u32 %v221, 4294901760
        %v492 = vsub.f32 %v221, %v491
        %493 = vmatpush1.msra.mxu0 %v492
        %494 = vmatprep.subr.mxu0 0.0
        %v495 = vand.u32 %v220, 4294901760
        %v496 = vsub.f32 %v220, %v495
        %497 = vmatpush1.msra.mxu0 %v496
        %498 = vmatprep.subr.mxu0 0.0
        %v499 = vand.u32 %v219, 4294901760
        %v500 = vsub.f32 %v219, %v499
        %501 = vmatpush1.msra.mxu0 %v500
        %502 = vmatprep.subr.mxu0 0.0
        %v503 = vand.u32 %v218, 4294901760
        %v504 = vsub.f32 %v218, %v503
        %505 = vmatpush1.msra.mxu0 %v504
        %506 = vmatprep.subr.mxu0 0.0
        %v507 = vand.u32 %v217, 4294901760
        %v508 = vsub.f32 %v217, %v507
        %509 = vmatpush1.msra.mxu0 %v508
        %510 = vmatprep.subr.mxu0 0.0
        %v511 = vand.u32 %v216, 4294901760
        %v512 = vsub.f32 %v216, %v511
        %513 = vmatpush1.msra.mxu0 %v512
        %514 = vmatprep.subr.mxu0 0.0
        %v515 = vand.u32 %v215, 4294901760
        %v516 = vsub.f32 %v215, %v515
        %517 = vmatpush1.msra.mxu0 %v516
        %518 = vmatprep.subr.mxu0 0.0
        %v519 = vand.u32 %v214, 4294901760
        %v520 = vsub.f32 %v214, %v519
        %521 = vmatpush1.msra.mxu0 %v520
        %522 = vmatprep.subr.mxu0 0.0
        %v523 = vand.u32 %v213, 4294901760
        %v524 = vsub.f32 %v213, %v523
        %525 = vmatpush1.msra.mxu0 %v524
        %526 = vmatprep.subr.mxu0 0.0
        %v527 = vand.u32 %v212, 4294901760
        %v528 = vsub.f32 %v212, %v527
        %529 = vmatpush1.msra.mxu0 %v528
        %530 = vmatprep.subr.mxu0 0.0
        %v531 = vand.u32 %v211, 4294901760
        %v532 = vsub.f32 %v211, %v531
        %533 = vmatpush1.msra.mxu0 %v532
        %534 = vmatprep.subr.mxu0 0.0
        %v535 = vand.u32 %v210, 4294901760
        %v536 = vsub.f32 %v210, %v535
        %537 = vmatpush1.msra.mxu0 %v536
        %538 = vmatprep.subr.mxu0 0.0
        %v539 = vand.u32 %v209, 4294901760
        %v540 = vsub.f32 %v209, %v539
        %541 = vmatpush1.msra.mxu0 %v540
        %542 = vmatprep.subr.mxu0 0.0
        %v543 = vand.u32 %v208, 4294901760
        %v544 = vsub.f32 %v208, %v543
        %545 = vmatpush1.msra.mxu0 %v544
        %546 = vmatprep.subr.mxu0 0.0
        %547 = vmatpush2.msra.mxu0 0.0
        %548 = vmatprep.subr.mxu0 0.0
        %549 = vmatpush2.msra.mxu0 0.0
        %550 = vmatprep.subr.mxu0 0.0
        %551 = vmatpush2.msra.mxu0 0.0
        %552 = vmatprep.subr.mxu0 0.0
        %553 = vmatpush2.msra.mxu0 0.0
        %554 = vmatprep.subr.mxu0 0.0
        %555 = vmatpush2.msra.mxu0 0.0
        %556 = vmatprep.subr.mxu0 0.0
        %557 = vmatpush2.msra.mxu0 0.0
        %558 = vmatprep.subr.mxu0 0.0
        %559 = vmatpush2.msra.mxu0 0.0
        %560 = vmatprep.subr.mxu0 0.0
        %561 = vmatpush2.msra.mxu0 0.0
        %562 = vmatprep.subr.mxu0 0.0
        %563 = vmatpush2.msra.mxu0 0.0
        %564 = vmatprep.subr.mxu0 0.0
        %565 = vmatpush2.msra.mxu0 0.0
        %566 = vmatprep.subr.mxu0 0.0
        %567 = vmatpush2.msra.mxu0 0.0
        %568 = vmatprep.subr.mxu0 0.0
        %569 = vmatpush2.msra.mxu0 0.0
        %570 = vmatprep.subr.mxu0 0.0
        %571 = vmatpush2.msra.mxu0 0.0
        %572 = vmatprep.subr.mxu0 0.0
        %573 = vmatpush2.msra.mxu0 0.0
        %574 = vmatprep.subr.mxu0 0.0
        %575 = vmatpush2.msra.mxu0 0.0
        %576 = vmatprep.subr.mxu0 0.0
        %577 = vmatpush2.msra.mxu0 0.0
        %578 = vmatprep.mubr.f32.mxu0 0.0
        %v579 = vand.u32 %v206, 4294901760
        %v580 = vsub.f32 %v206, %v579
        %581 = vmatmul.mubr.f32.gmra.mxu0 %v580
        %v582 = vpop.f32.mrf.mxu0
        %v583 = vadd.f32 %v473, %v582
        %v584 = vpop.f32.mrf.mxu0
        %585 = vmatprep.mubr.f32.mxu0 0.0
        %v586 = vand.u32 %v207, 4294901760
        %v587 = vsub.f32 %v207, %v586
        %588 = vmatmul.mubr.f32.gmra.mxu0 %v587
        %v589 = vpop.f32.mrf.mxu0
        %v590 = vadd.f32 %v479, %v589
        %v591 = vpop.f32.mrf.mxu0
        %592 = vdwg.mxu0
        %593 = vmatprep.subr.mxu0 0.0
        %v594 = vand.u32 %v223, 4294901760
        %595 = vmatpush1.msra.mxu0 %v594
        %596 = vmatprep.subr.mxu0 0.0
        %v597 = vand.u32 %v222, 4294901760
        %598 = vmatpush1.msra.mxu0 %v597
        %599 = vmatprep.subr.mxu0 0.0
        %v600 = vand.u32 %v221, 4294901760
        %601 = vmatpush1.msra.mxu0 %v600
        %602 = vmatprep.subr.mxu0 0.0
        %v603 = vand.u32 %v220, 4294901760
        %604 = vmatpush1.msra.mxu0 %v603
        %605 = vmatprep.subr.mxu0 0.0
        %v606 = vand.u32 %v219, 4294901760
        %607 = vmatpush1.msra.mxu0 %v606
        %608 = vmatprep.subr.mxu0 0.0
        %v609 = vand.u32 %v218, 4294901760
        %610 = vmatpush1.msra.mxu0 %v609
        %611 = vmatprep.subr.mxu0 0.0
        %v612 = vand.u32 %v217, 4294901760
        %613 = vmatpush1.msra.mxu0 %v612
        %614 = vmatprep.subr.mxu0 0.0
        %v615 = vand.u32 %v216, 4294901760
        %616 = vmatpush1.msra.mxu0 %v615
        %617 = vmatprep.subr.mxu0 0.0
        %v618 = vand.u32 %v215, 4294901760
        %619 = vmatpush1.msra.mxu0 %v618
        %620 = vmatprep.subr.mxu0 0.0
        %v621 = vand.u32 %v214, 4294901760
        %622 = vmatpush1.msra.mxu0 %v621
        %623 = vmatprep.subr.mxu0 0.0
        %v624 = vand.u32 %v213, 4294901760
        %625 = vmatpush1.msra.mxu0 %v624
        %626 = vmatprep.subr.mxu0 0.0
        %v627 = vand.u32 %v212, 4294901760
        %628 = vmatpush1.msra.mxu0 %v627
        %629 = vmatprep.subr.mxu0 0.0
        %v630 = vand.u32 %v211, 4294901760
        %631 = vmatpush1.msra.mxu0 %v630
        %632 = vmatprep.subr.mxu0 0.0
        %v633 = vand.u32 %v210, 4294901760
        %634 = vmatpush1.msra.mxu0 %v633
        %635 = vmatprep.subr.mxu0 0.0
        %v636 = vand.u32 %v209, 4294901760
        %637 = vmatpush1.msra.mxu0 %v636
        %638 = vmatprep.subr.mxu0 0.0
        %v639 = vand.u32 %v208, 4294901760
        %640 = vmatpush1.msra.mxu0 %v639
        %641 = vmatprep.subr.mxu0 0.0
        %642 = vmatpush2.msra.mxu0 0.0
        %643 = vmatprep.subr.mxu0 0.0
        %644 = vmatpush2.msra.mxu0 0.0
        %645 = vmatprep.subr.mxu0 0.0
        %646 = vmatpush2.msra.mxu0 0.0
        %647 = vmatprep.subr.mxu0 0.0
        %648 = vmatpush2.msra.mxu0 0.0
        %649 = vmatprep.subr.mxu0 0.0
        %650 = vmatpush2.msra.mxu0 0.0
        %651 = vmatprep.subr.mxu0 0.0
        %652 = vmatpush2.msra.mxu0 0.0
        %653 = vmatprep.subr.mxu0 0.0
        %654 = vmatpush2.msra.mxu0 0.0
        %655 = vmatprep.subr.mxu0 0.0
        %656 = vmatpush2.msra.mxu0 0.0
        %657 = vmatprep.subr.mxu0 0.0
        %658 = vmatpush2.msra.mxu0 0.0
        %659 = vmatprep.subr.mxu0 0.0
        %660 = vmatpush2.msra.mxu0 0.0
        %661 = vmatprep.subr.mxu0 0.0
        %662 = vmatpush2.msra.mxu0 0.0
        %663 = vmatprep.subr.mxu0 0.0
        %664 = vmatpush2.msra.mxu0 0.0
        %665 = vmatprep.subr.mxu0 0.0
        %666 = vmatpush2.msra.mxu0 0.0
        %667 = vmatprep.subr.mxu0 0.0
        %668 = vmatpush2.msra.mxu0 0.0
        %669 = vmatprep.subr.mxu0 0.0
        %670 = vmatpush2.msra.mxu0 0.0
        %671 = vmatprep.subr.mxu0 0.0
        %672 = vmatpush2.msra.mxu0 0.0
        %673 = vmatprep.mubr.f32.mxu0 0.0
        %v674 = vand.u32 %v206, 4294901760
        %v675 = vsub.f32 %v206, %v674
        %v676 = vand.u32 %v675, 4294901760
        %677 = vmatmul.mubr.f32.gmra.mxu0 %v676
        %v678 = vpop.f32.mrf.mxu0
        %v679 = vadd.f32 %v583, %v678
        %v680 = vpop.f32.mrf.mxu0
        %681 = vmatprep.mubr.f32.mxu0 0.0
        %v682 = vand.u32 %v207, 4294901760
        %v683 = vsub.f32 %v207, %v682
        %v684 = vand.u32 %v683, 4294901760
        %685 = vmatmul.mubr.f32.gmra.mxu0 %v684
        %v686 = vpop.f32.mrf.mxu0
        %v687 = vadd.f32 %v590, %v686
        %v688 = vpop.f32.mrf.mxu0
        %689 = vdwg.mxu0
        %690 = vmatprep.subr.mxu0 0.0
        %v691 = vand.u32 %v223, 4294901760
        %v692 = vsub.f32 %v223, %v691
        %v693 = vand.u32 %v692, 4294901760
        %694 = vmatpush1.msra.mxu0 %v693
        %695 = vmatprep.subr.mxu0 0.0
        %v696 = vand.u32 %v222, 4294901760
        %v697 = vsub.f32 %v222, %v696
        %v698 = vand.u32 %v697, 4294901760
        %699 = vmatpush1.msra.mxu0 %v698
        %700 = vmatprep.subr.mxu0 0.0
        %v701 = vand.u32 %v221, 4294901760
        %v702 = vsub.f32 %v221, %v701
        %v703 = vand.u32 %v702, 4294901760
        %704 = vmatpush1.msra.mxu0 %v703
        %705 = vmatprep.subr.mxu0 0.0
        %v706 = vand.u32 %v220, 4294901760
        %v707 = vsub.f32 %v220, %v706
        %v708 = vand.u32 %v707, 4294901760
        %709 = vmatpush1.msra.mxu0 %v708
        %710 = vmatprep.subr.mxu0 0.0
        %v711 = vand.u32 %v219, 4294901760
        %v712 = vsub.f32 %v219, %v711
        %v713 = vand.u32 %v712, 4294901760
        %714 = vmatpush1.msra.mxu0 %v713
        %715 = vmatprep.subr.mxu0 0.0
        %v716 = vand.u32 %v218, 4294901760
        %v717 = vsub.f32 %v218, %v716
        %v718 = vand.u32 %v717, 4294901760
        %719 = vmatpush1.msra.mxu0 %v718
        %720 = vmatprep.subr.mxu0 0.0
        %v721 = vand.u32 %v217, 4294901760
        %v722 = vsub.f32 %v217, %v721
        %v723 = vand.u32 %v722, 4294901760
        %724 = vmatpush1.msra.mxu0 %v723
        %725 = vmatprep.subr.mxu0 0.0
        %v726 = vand.u32 %v216, 4294901760
        %v727 = vsub.f32 %v216, %v726
        %v728 = vand.u32 %v727, 4294901760
        %729 = vmatpush1.msra.mxu0 %v728
        %730 = vmatprep.subr.mxu0 0.0
        %v731 = vand.u32 %v215, 4294901760
        %v732 = vsub.f32 %v215, %v731
        %v733 = vand.u32 %v732, 4294901760
        %734 = vmatpush1.msra.mxu0 %v733
        %735 = vmatprep.subr.mxu0 0.0
        %v736 = vand.u32 %v214, 4294901760
        %v737 = vsub.f32 %v214, %v736
        %v738 = vand.u32 %v737, 4294901760
        %739 = vmatpush1.msra.mxu0 %v738
        %740 = vmatprep.subr.mxu0 0.0
        %v741 = vand.u32 %v213, 4294901760
        %v742 = vsub.f32 %v213, %v741
        %v743 = vand.u32 %v742, 4294901760
        %744 = vmatpush1.msra.mxu0 %v743
        %745 = vmatprep.subr.mxu0 0.0
        %v746 = vand.u32 %v212, 4294901760
        %v747 = vsub.f32 %v212, %v746
        %v748 = vand.u32 %v747, 4294901760
        %749 = vmatpush1.msra.mxu0 %v748
        %750 = vmatprep.subr.mxu0 0.0
        %v751 = vand.u32 %v211, 4294901760
        %v752 = vsub.f32 %v211, %v751
        %v753 = vand.u32 %v752, 4294901760
        %754 = vmatpush1.msra.mxu0 %v753
        %755 = vmatprep.subr.mxu0 0.0
        %v756 = vand.u32 %v210, 4294901760
        %v757 = vsub.f32 %v210, %v756
        %v758 = vand.u32 %v757, 4294901760
        %759 = vmatpush1.msra.mxu0 %v758
        %760 = vmatprep.subr.mxu0 0.0
        %v761 = vand.u32 %v209, 4294901760
        %v762 = vsub.f32 %v209, %v761
        %v763 = vand.u32 %v762, 4294901760
        %764 = vmatpush1.msra.mxu0 %v763
        %765 = vmatprep.subr.mxu0 0.0
        %v766 = vand.u32 %v208, 4294901760
        %v767 = vsub.f32 %v208, %v766
        %v768 = vand.u32 %v767, 4294901760
        %769 = vmatpush1.msra.mxu0 %v768
        %770 = vmatprep.subr.mxu0 0.0
        %771 = vmatpush2.msra.mxu0 0.0
        %772 = vmatprep.subr.mxu0 0.0
        %773 = vmatpush2.msra.mxu0 0.0
        %774 = vmatprep.subr.mxu0 0.0
        %775 = vmatpush2.msra.mxu0 0.0
        %776 = vmatprep.subr.mxu0 0.0
        %777 = vmatpush2.msra.mxu0 0.0
        %778 = vmatprep.subr.mxu0 0.0
        %779 = vmatpush2.msra.mxu0 0.0
        %780 = vmatprep.subr.mxu0 0.0
        %781 = vmatpush2.msra.mxu0 0.0
        %782 = vmatprep.subr.mxu0 0.0
        %783 = vmatpush2.msra.mxu0 0.0
        %784 = vmatprep.subr.mxu0 0.0
        %785 = vmatpush2.msra.mxu0 0.0
        %786 = vmatprep.subr.mxu0 0.0
        %787 = vmatpush2.msra.mxu0 0.0
        %788 = vmatprep.subr.mxu0 0.0
        %789 = vmatpush2.msra.mxu0 0.0
        %790 = vmatprep.subr.mxu0 0.0
        %791 = vmatpush2.msra.mxu0 0.0
        %792 = vmatprep.subr.mxu0 0.0
        %793 = vmatpush2.msra.mxu0 0.0
        %794 = vmatprep.subr.mxu0 0.0
        %795 = vmatpush2.msra.mxu0 0.0
        %796 = vmatprep.subr.mxu0 0.0
        %797 = vmatpush2.msra.mxu0 0.0
        %798 = vmatprep.subr.mxu0 0.0
        %799 = vmatpush2.msra.mxu0 0.0
        %800 = vmatprep.subr.mxu0 0.0
        %801 = vmatpush2.msra.mxu0 0.0
        %802 = vmatprep.mubr.f32.mxu0 0.0
        %v803 = vand.u32 %v206, 4294901760
        %804 = vmatmul.mubr.f32.gmra.mxu0 %v803
        %v805 = vpop.f32.mrf.mxu0
        %v806 = vadd.f32 %v679, %v805
        %v807 = vpop.f32.mrf.mxu0
        %808 = vmatprep.mubr.f32.mxu0 0.0
        %v809 = vand.u32 %v207, 4294901760
        %810 = vmatmul.mubr.f32.gmra.mxu0 %v809
        %v811 = vpop.f32.mrf.mxu0
        %v812 = vadd.f32 %v687, %v811
        %v813 = vpop.f32.mrf.mxu0
        %814 = vdwg.mxu0
        %815 = vmatprep.subr.mxu0 0.0
        %v816 = vand.u32 %v223, 4294901760
        %817 = vmatpush1.msra.mxu0 %v816
        %818 = vmatprep.subr.mxu0 0.0
        %v819 = vand.u32 %v222, 4294901760
        %820 = vmatpush1.msra.mxu0 %v819
        %821 = vmatprep.subr.mxu0 0.0
        %v822 = vand.u32 %v221, 4294901760
        %823 = vmatpush1.msra.mxu0 %v822
        %824 = vmatprep.subr.mxu0 0.0
        %v825 = vand.u32 %v220, 4294901760
        %826 = vmatpush1.msra.mxu0 %v825
        %827 = vmatprep.subr.mxu0 0.0
        %v828 = vand.u32 %v219, 4294901760
        %829 = vmatpush1.msra.mxu0 %v828
        %830 = vmatprep.subr.mxu0 0.0
        %v831 = vand.u32 %v218, 4294901760
        %832 = vmatpush1.msra.mxu0 %v831
        %833 = vmatprep.subr.mxu0 0.0
        %v834 = vand.u32 %v217, 4294901760
        %835 = vmatpush1.msra.mxu0 %v834
        %836 = vmatprep.subr.mxu0 0.0
        %v837 = vand.u32 %v216, 4294901760
        %838 = vmatpush1.msra.mxu0 %v837
        %839 = vmatprep.subr.mxu0 0.0
        %v840 = vand.u32 %v215, 4294901760
        %841 = vmatpush1.msra.mxu0 %v840
        %842 = vmatprep.subr.mxu0 0.0
        %v843 = vand.u32 %v214, 4294901760
        %844 = vmatpush1.msra.mxu0 %v843
        %845 = vmatprep.subr.mxu0 0.0
        %v846 = vand.u32 %v213, 4294901760
        %847 = vmatpush1.msra.mxu0 %v846
        %848 = vmatprep.subr.mxu0 0.0
        %v849 = vand.u32 %v212, 4294901760
        %850 = vmatpush1.msra.mxu0 %v849
        %851 = vmatprep.subr.mxu0 0.0
        %v852 = vand.u32 %v211, 4294901760
        %853 = vmatpush1.msra.mxu0 %v852
        %854 = vmatprep.subr.mxu0 0.0
        %v855 = vand.u32 %v210, 4294901760
        %856 = vmatpush1.msra.mxu0 %v855
        %857 = vmatprep.subr.mxu0 0.0
        %v858 = vand.u32 %v209, 4294901760
        %859 = vmatpush1.msra.mxu0 %v858
        %860 = vmatprep.subr.mxu0 0.0
        %v861 = vand.u32 %v208, 4294901760
        %862 = vmatpush1.msra.mxu0 %v861
        %863 = vmatprep.subr.mxu0 0.0
        %864 = vmatpush2.msra.mxu0 0.0
        %865 = vmatprep.subr.mxu0 0.0
        %866 = vmatpush2.msra.mxu0 0.0
        %867 = vmatprep.subr.mxu0 0.0
        %868 = vmatpush2.msra.mxu0 0.0
        %869 = vmatprep.subr.mxu0 0.0
        %870 = vmatpush2.msra.mxu0 0.0
        %871 = vmatprep.subr.mxu0 0.0
        %872 = vmatpush2.msra.mxu0 0.0
        %873 = vmatprep.subr.mxu0 0.0
        %874 = vmatpush2.msra.mxu0 0.0
        %875 = vmatprep.subr.mxu0 0.0
        %876 = vmatpush2.msra.mxu0 0.0
        %877 = vmatprep.subr.mxu0 0.0
        %878 = vmatpush2.msra.mxu0 0.0
        %879 = vmatprep.subr.mxu0 0.0
        %880 = vmatpush2.msra.mxu0 0.0
        %881 = vmatprep.subr.mxu0 0.0
        %882 = vmatpush2.msra.mxu0 0.0
        %883 = vmatprep.subr.mxu0 0.0
        %884 = vmatpush2.msra.mxu0 0.0
        %885 = vmatprep.subr.mxu0 0.0
        %886 = vmatpush2.msra.mxu0 0.0
        %887 = vmatprep.subr.mxu0 0.0
        %888 = vmatpush2.msra.mxu0 0.0
        %889 = vmatprep.subr.mxu0 0.0
        %890 = vmatpush2.msra.mxu0 0.0
        %891 = vmatprep.subr.mxu0 0.0
        %892 = vmatpush2.msra.mxu0 0.0
        %893 = vmatprep.subr.mxu0 0.0
        %894 = vmatpush2.msra.mxu0 0.0
        %895 = vmatprep.mubr.f32.mxu0 0.0
        %v896 = vand.u32 %v206, 4294901760
        %897 = vmatmul.mubr.f32.gmra.mxu0 %v896
        %v898 = vpop.f32.mrf.mxu0
        %v899 = vadd.f32 %v806, %v898
        %v900 = vpop.f32.mrf.mxu0
        %901 = vmatprep.mubr.f32.mxu0 0.0
        %v902 = vand.u32 %v207, 4294901760
        %903 = vmatmul.mubr.f32.gmra.mxu0 %v902
        %v904 = vpop.f32.mrf.mxu0
        %v905 = vadd.f32 %v812, %v904
        %v906 = vpop.f32.mrf.mxu0
        %907 = vdwg.mxu0
        %v908 = vmul.f32 %v206, %v206
        %v909 = vmul.f32 %v207, %v207
        %910 = vmatprep.subr.mxu0 0.0
        %v911 = vand.u32 %v223, 4294901760
        %912 = vmatpush1.msra.mxu0 %v911
        %913 = vmatprep.subr.mxu0 0.0
        %v914 = vand.u32 %v222, 4294901760
        %915 = vmatpush1.msra.mxu0 %v914
        %916 = vmatprep.subr.mxu0 0.0
        %v917 = vand.u32 %v221, 4294901760
        %918 = vmatpush1.msra.mxu0 %v917
        %919 = vmatprep.subr.mxu0 0.0
        %v920 = vand.u32 %v220, 4294901760
        %921 = vmatpush1.msra.mxu0 %v920
        %922 = vmatprep.subr.mxu0 0.0
        %v923 = vand.u32 %v219, 4294901760
        %924 = vmatpush1.msra.mxu0 %v923
        %925 = vmatprep.subr.mxu0 0.0
        %v926 = vand.u32 %v218, 4294901760
        %927 = vmatpush1.msra.mxu0 %v926
        %928 = vmatprep.subr.mxu0 0.0
        %v929 = vand.u32 %v217, 4294901760
        %930 = vmatpush1.msra.mxu0 %v929
        %931 = vmatprep.subr.mxu0 0.0
        %v932 = vand.u32 %v216, 4294901760
        %933 = vmatpush1.msra.mxu0 %v932
        %934 = vmatprep.subr.mxu0 0.0
        %v935 = vand.u32 %v215, 4294901760
        %936 = vmatpush1.msra.mxu0 %v935
        %937 = vmatprep.subr.mxu0 0.0
        %v938 = vand.u32 %v214, 4294901760
        %939 = vmatpush1.msra.mxu0 %v938
        %940 = vmatprep.subr.mxu0 0.0
        %v941 = vand.u32 %v213, 4294901760
        %942 = vmatpush1.msra.mxu0 %v941
        %943 = vmatprep.subr.mxu0 0.0
        %v944 = vand.u32 %v212, 4294901760
        %945 = vmatpush1.msra.mxu0 %v944
        %946 = vmatprep.subr.mxu0 0.0
        %v947 = vand.u32 %v211, 4294901760
        %948 = vmatpush1.msra.mxu0 %v947
        %949 = vmatprep.subr.mxu0 0.0
        %v950 = vand.u32 %v210, 4294901760
        %951 = vmatpush1.msra.mxu0 %v950
        %952 = vmatprep.subr.mxu0 0.0
        %v953 = vand.u32 %v209, 4294901760
        %954 = vmatpush1.msra.mxu0 %v953
        %955 = vmatprep.subr.mxu0 0.0
        %v956 = vand.u32 %v208, 4294901760
        %957 = vmatpush1.msra.mxu0 %v956
        %958 = vmatprep.subr.mxu0 0.0
        %959 = vmatpush2.msra.mxu0 0.0
        %960 = vmatprep.subr.mxu0 0.0
        %961 = vmatpush2.msra.mxu0 0.0
        %962 = vmatprep.subr.mxu0 0.0
        %963 = vmatpush2.msra.mxu0 0.0
        %964 = vmatprep.subr.mxu0 0.0
        %965 = vmatpush2.msra.mxu0 0.0
        %966 = vmatprep.subr.mxu0 0.0
        %967 = vmatpush2.msra.mxu0 0.0
        %968 = vmatprep.subr.mxu0 0.0
        %969 = vmatpush2.msra.mxu0 0.0
        %970 = vmatprep.subr.mxu0 0.0
        %971 = vmatpush2.msra.mxu0 0.0
        %972 = vmatprep.subr.mxu0 0.0
        %973 = vmatpush2.msra.mxu0 0.0
        %974 = vmatprep.subr.mxu0 0.0
        %975 = vmatpush2.msra.mxu0 0.0
        %976 = vmatprep.subr.mxu0 0.0
        %977 = vmatpush2.msra.mxu0 0.0
        %978 = vmatprep.subr.mxu0 0.0
        %979 = vmatpush2.msra.mxu0 0.0
        %980 = vmatprep.subr.mxu0 0.0
        %981 = vmatpush2.msra.mxu0 0.0
        %982 = vmatprep.subr.mxu0 0.0
        %983 = vmatpush2.msra.mxu0 0.0
        %984 = vmatprep.subr.mxu0 0.0
        %985 = vmatpush2.msra.mxu0 0.0
        %986 = vmatprep.subr.mxu0 0.0
        %987 = vmatpush2.msra.mxu0 0.0
        %988 = vmatprep.subr.mxu0 0.0
        %989 = vmatpush2.msra.mxu0 0.0
        %990 = vmatprep.mubr.f32.mxu0 0.0
        %v991 = vand.u32 %v908, 4294901760
        %v992 = vsub.f32 %v908, %v991
        %v993 = vand.u32 %v992, 4294901760
        %v994 = vsub.f32 %v992, %v993
        %v995 = vand.u32 %v994, 4294901760
        %996 = vmatmul.mubr.f32.gmra.mxu0 %v995
        %v997 = vpop.f32.mrf.mxu0
        %v998 = vadd.f32 0.0, %v997
        %v999 = vpop.f32.mrf.mxu0
        %1000 = vmatprep.mubr.f32.mxu0 0.0
        %v1001 = vand.u32 %v909, 4294901760
        %v1002 = vsub.f32 %v909, %v1001
        %v1003 = vand.u32 %v1002, 4294901760
        %v1004 = vsub.f32 %v1002, %v1003
        %v1005 = vand.u32 %v1004, 4294901760
        %1006 = vmatmul.mubr.f32.gmra.mxu0 %v1005
        %v1007 = vpop.f32.mrf.mxu0
        %v1008 = vadd.f32 0.0, %v1007
        %v1009 = vpop.f32.mrf.mxu0
        %1010 = vdwg.mxu0
        %1011 = vmatprep.subr.mxu0 0.0
        %v1012 = vand.u32 %v223, 4294901760
        %v1013 = vsub.f32 %v223, %v1012
        %v1014 = vand.u32 %v1013, 4294901760
        %v1015 = vsub.f32 %v1013, %v1014
        %v1016 = vand.u32 %v1015, 4294901760
        %1017 = vmatpush1.msra.mxu0 %v1016
        %1018 = vmatprep.subr.mxu0 0.0
        %v1019 = vand.u32 %v222, 4294901760
        %v1020 = vsub.f32 %v222, %v1019
        %v1021 = vand.u32 %v1020, 4294901760
        %v1022 = vsub.f32 %v1020, %v1021
        %v1023 = vand.u32 %v1022, 4294901760
        %1024 = vmatpush1.msra.mxu0 %v1023
        %1025 = vmatprep.subr.mxu0 0.0
        %v1026 = vand.u32 %v221, 4294901760
        %v1027 = vsub.f32 %v221, %v1026
        %v1028 = vand.u32 %v1027, 4294901760
        %v1029 = vsub.f32 %v1027, %v1028
        %v1030 = vand.u32 %v1029, 4294901760
        %1031 = vmatpush1.msra.mxu0 %v1030
        %1032 = vmatprep.subr.mxu0 0.0
        %v1033 = vand.u32 %v220, 4294901760
        %v1034 = vsub.f32 %v220, %v1033
        %v1035 = vand.u32 %v1034, 4294901760
        %v1036 = vsub.f32 %v1034, %v1035
        %v1037 = vand.u32 %v1036, 4294901760
        %1038 = vmatpush1.msra.mxu0 %v1037
        %1039 = vmatprep.subr.mxu0 0.0
        %v1040 = vand.u32 %v219, 4294901760
        %v1041 = vsub.f32 %v219, %v1040
        %v1042 = vand.u32 %v1041, 4294901760
        %v1043 = vsub.f32 %v1041, %v1042
        %v1044 = vand.u32 %v1043, 4294901760
        %1045 = vmatpush1.msra.mxu0 %v1044
        %1046 = vmatprep.subr.mxu0 0.0
        %v1047 = vand.u32 %v218, 4294901760
        %v1048 = vsub.f32 %v218, %v1047
        %v1049 = vand.u32 %v1048, 4294901760
        %v1050 = vsub.f32 %v1048, %v1049
        %v1051 = vand.u32 %v1050, 4294901760
        %1052 = vmatpush1.msra.mxu0 %v1051
        %1053 = vmatprep.subr.mxu0 0.0
        %v1054 = vand.u32 %v217, 4294901760
        %v1055 = vsub.f32 %v217, %v1054
        %v1056 = vand.u32 %v1055, 4294901760
        %v1057 = vsub.f32 %v1055, %v1056
        %v1058 = vand.u32 %v1057, 4294901760
        %1059 = vmatpush1.msra.mxu0 %v1058
        %1060 = vmatprep.subr.mxu0 0.0
        %v1061 = vand.u32 %v216, 4294901760
        %v1062 = vsub.f32 %v216, %v1061
        %v1063 = vand.u32 %v1062, 4294901760
        %v1064 = vsub.f32 %v1062, %v1063
        %v1065 = vand.u32 %v1064, 4294901760
        %1066 = vmatpush1.msra.mxu0 %v1065
        %1067 = vmatprep.subr.mxu0 0.0
        %v1068 = vand.u32 %v215, 4294901760
        %v1069 = vsub.f32 %v215, %v1068
        %v1070 = vand.u32 %v1069, 4294901760
        %v1071 = vsub.f32 %v1069, %v1070
        %v1072 = vand.u32 %v1071, 4294901760
        %1073 = vmatpush1.msra.mxu0 %v1072
        %1074 = vmatprep.subr.mxu0 0.0
        %v1075 = vand.u32 %v214, 4294901760
        %v1076 = vsub.f32 %v214, %v1075
        %v1077 = vand.u32 %v1076, 4294901760
        %v1078 = vsub.f32 %v1076, %v1077
        %v1079 = vand.u32 %v1078, 4294901760
        %1080 = vmatpush1.msra.mxu0 %v1079
        %1081 = vmatprep.subr.mxu0 0.0
        %v1082 = vand.u32 %v213, 4294901760
        %v1083 = vsub.f32 %v213, %v1082
        %v1084 = vand.u32 %v1083, 4294901760
        %v1085 = vsub.f32 %v1083, %v1084
        %v1086 = vand.u32 %v1085, 4294901760
        %1087 = vmatpush1.msra.mxu0 %v1086
        %1088 = vmatprep.subr.mxu0 0.0
        %v1089 = vand.u32 %v212, 4294901760
        %v1090 = vsub.f32 %v212, %v1089
        %v1091 = vand.u32 %v1090, 4294901760
        %v1092 = vsub.f32 %v1090, %v1091
        %v1093 = vand.u32 %v1092, 4294901760
        %1094 = vmatpush1.msra.mxu0 %v1093
        %1095 = vmatprep.subr.mxu0 0.0
        %v1096 = vand.u32 %v211, 4294901760
        %v1097 = vsub.f32 %v211, %v1096
        %v1098 = vand.u32 %v1097, 4294901760
        %v1099 = vsub.f32 %v1097, %v1098
        %v1100 = vand.u32 %v1099, 4294901760
        %1101 = vmatpush1.msra.mxu0 %v1100
        %1102 = vmatprep.subr.mxu0 0.0
        %v1103 = vand.u32 %v210, 4294901760
        %v1104 = vsub.f32 %v210, %v1103
        %v1105 = vand.u32 %v1104, 4294901760
        %v1106 = vsub.f32 %v1104, %v1105
        %v1107 = vand.u32 %v1106, 4294901760
        %1108 = vmatpush1.msra.mxu0 %v1107
        %1109 = vmatprep.subr.mxu0 0.0
        %v1110 = vand.u32 %v209, 4294901760
        %v1111 = vsub.f32 %v209, %v1110
        %v1112 = vand.u32 %v1111, 4294901760
        %v1113 = vsub.f32 %v1111, %v1112
        %v1114 = vand.u32 %v1113, 4294901760
        %1115 = vmatpush1.msra.mxu0 %v1114
        %1116 = vmatprep.subr.mxu0 0.0
        %v1117 = vand.u32 %v208, 4294901760
        %v1118 = vsub.f32 %v208, %v1117
        %v1119 = vand.u32 %v1118, 4294901760
        %v1120 = vsub.f32 %v1118, %v1119
        %v1121 = vand.u32 %v1120, 4294901760
        %1122 = vmatpush1.msra.mxu0 %v1121
        %1123 = vmatprep.subr.mxu0 0.0
        %1124 = vmatpush2.msra.mxu0 0.0
        %1125 = vmatprep.subr.mxu0 0.0
        %1126 = vmatpush2.msra.mxu0 0.0
        %1127 = vmatprep.subr.mxu0 0.0
        %1128 = vmatpush2.msra.mxu0 0.0
        %1129 = vmatprep.subr.mxu0 0.0
        %1130 = vmatpush2.msra.mxu0 0.0
        %1131 = vmatprep.subr.mxu0 0.0
        %1132 = vmatpush2.msra.mxu0 0.0
        %1133 = vmatprep.subr.mxu0 0.0
        %1134 = vmatpush2.msra.mxu0 0.0
        %1135 = vmatprep.subr.mxu0 0.0
        %1136 = vmatpush2.msra.mxu0 0.0
        %1137 = vmatprep.subr.mxu0 0.0
        %1138 = vmatpush2.msra.mxu0 0.0
        %1139 = vmatprep.subr.mxu0 0.0
        %1140 = vmatpush2.msra.mxu0 0.0
        %1141 = vmatprep.subr.mxu0 0.0
        %1142 = vmatpush2.msra.mxu0 0.0
        %1143 = vmatprep.subr.mxu0 0.0
        %1144 = vmatpush2.msra.mxu0 0.0
        %1145 = vmatprep.subr.mxu0 0.0
        %1146 = vmatpush2.msra.mxu0 0.0
        %1147 = vmatprep.subr.mxu0 0.0
        %1148 = vmatpush2.msra.mxu0 0.0
        %1149 = vmatprep.subr.mxu0 0.0
        %1150 = vmatpush2.msra.mxu0 0.0
        %1151 = vmatprep.subr.mxu0 0.0
        %1152 = vmatpush2.msra.mxu0 0.0
        %1153 = vmatprep.subr.mxu0 0.0
        %1154 = vmatpush2.msra.mxu0 0.0
        %1155 = vmatprep.mubr.f32.mxu0 0.0
        %v1156 = vand.u32 %v908, 4294901760
        %1157 = vmatmul.mubr.f32.gmra.mxu0 %v1156
        %v1158 = vpop.f32.mrf.mxu0
        %v1159 = vadd.f32 %v998, %v1158
        %v1160 = vpop.f32.mrf.mxu0
        %1161 = vmatprep.mubr.f32.mxu0 0.0
        %v1162 = vand.u32 %v909, 4294901760
        %1163 = vmatmul.mubr.f32.gmra.mxu0 %v1162
        %v1164 = vpop.f32.mrf.mxu0
        %v1165 = vadd.f32 %v1008, %v1164
        %v1166 = vpop.f32.mrf.mxu0
        %1167 = vdwg.mxu0
        %1168 = vmatprep.subr.mxu0 0.0
        %v1169 = vand.u32 %v223, 4294901760
        %v1170 = vsub.f32 %v223, %v1169
        %1171 = vmatpush1.msra.mxu0 %v1170
        %1172 = vmatprep.subr.mxu0 0.0
        %v1173 = vand.u32 %v222, 4294901760
        %v1174 = vsub.f32 %v222, %v1173
        %1175 = vmatpush1.msra.mxu0 %v1174
        %1176 = vmatprep.subr.mxu0 0.0
        %v1177 = vand.u32 %v221, 4294901760
        %v1178 = vsub.f32 %v221, %v1177
        %1179 = vmatpush1.msra.mxu0 %v1178
        %1180 = vmatprep.subr.mxu0 0.0
        %v1181 = vand.u32 %v220, 4294901760
        %v1182 = vsub.f32 %v220, %v1181
        %1183 = vmatpush1.msra.mxu0 %v1182
        %1184 = vmatprep.subr.mxu0 0.0
        %v1185 = vand.u32 %v219, 4294901760
        %v1186 = vsub.f32 %v219, %v1185
        %1187 = vmatpush1.msra.mxu0 %v1186
        %1188 = vmatprep.subr.mxu0 0.0
        %v1189 = vand.u32 %v218, 4294901760
        %v1190 = vsub.f32 %v218, %v1189
        %1191 = vmatpush1.msra.mxu0 %v1190
        %1192 = vmatprep.subr.mxu0 0.0
        %v1193 = vand.u32 %v217, 4294901760
        %v1194 = vsub.f32 %v217, %v1193
        %1195 = vmatpush1.msra.mxu0 %v1194
        %1196 = vmatprep.subr.mxu0 0.0
        %v1197 = vand.u32 %v216, 4294901760
        %v1198 = vsub.f32 %v216, %v1197
        %1199 = vmatpush1.msra.mxu0 %v1198
        %1200 = vmatprep.subr.mxu0 0.0
        %v1201 = vand.u32 %v215, 4294901760
        %v1202 = vsub.f32 %v215, %v1201
        %1203 = vmatpush1.msra.mxu0 %v1202
        %1204 = vmatprep.subr.mxu0 0.0
        %v1205 = vand.u32 %v214, 4294901760
        %v1206 = vsub.f32 %v214, %v1205
        %1207 = vmatpush1.msra.mxu0 %v1206
        %1208 = vmatprep.subr.mxu0 0.0
        %v1209 = vand.u32 %v213, 4294901760
        %v1210 = vsub.f32 %v213, %v1209
        %1211 = vmatpush1.msra.mxu0 %v1210
        %1212 = vmatprep.subr.mxu0 0.0
        %v1213 = vand.u32 %v212, 4294901760
        %v1214 = vsub.f32 %v212, %v1213
        %1215 = vmatpush1.msra.mxu0 %v1214
        %1216 = vmatprep.subr.mxu0 0.0
        %v1217 = vand.u32 %v211, 4294901760
        %v1218 = vsub.f32 %v211, %v1217
        %1219 = vmatpush1.msra.mxu0 %v1218
        %1220 = vmatprep.subr.mxu0 0.0
        %v1221 = vand.u32 %v210, 4294901760
        %v1222 = vsub.f32 %v210, %v1221
        %1223 = vmatpush1.msra.mxu0 %v1222
        %1224 = vmatprep.subr.mxu0 0.0
        %v1225 = vand.u32 %v209, 4294901760
        %v1226 = vsub.f32 %v209, %v1225
        %1227 = vmatpush1.msra.mxu0 %v1226
        %1228 = vmatprep.subr.mxu0 0.0
        %v1229 = vand.u32 %v208, 4294901760
        %v1230 = vsub.f32 %v208, %v1229
        %1231 = vmatpush1.msra.mxu0 %v1230
        %1232 = vmatprep.subr.mxu0 0.0
        %1233 = vmatpush2.msra.mxu0 0.0
        %1234 = vmatprep.subr.mxu0 0.0
        %1235 = vmatpush2.msra.mxu0 0.0
        %1236 = vmatprep.subr.mxu0 0.0
        %1237 = vmatpush2.msra.mxu0 0.0
        %1238 = vmatprep.subr.mxu0 0.0
        %1239 = vmatpush2.msra.mxu0 0.0
        %1240 = vmatprep.subr.mxu0 0.0
        %1241 = vmatpush2.msra.mxu0 0.0
        %1242 = vmatprep.subr.mxu0 0.0
        %1243 = vmatpush2.msra.mxu0 0.0
        %1244 = vmatprep.subr.mxu0 0.0
        %1245 = vmatpush2.msra.mxu0 0.0
        %1246 = vmatprep.subr.mxu0 0.0
        %1247 = vmatpush2.msra.mxu0 0.0
        %1248 = vmatprep.subr.mxu0 0.0
        %1249 = vmatpush2.msra.mxu0 0.0
        %1250 = vmatprep.subr.mxu0 0.0
        %1251 = vmatpush2.msra.mxu0 0.0
        %1252 = vmatprep.subr.mxu0 0.0
        %1253 = vmatpush2.msra.mxu0 0.0
        %1254 = vmatprep.subr.mxu0 0.0
        %1255 = vmatpush2.msra.mxu0 0.0
        %1256 = vmatprep.subr.mxu0 0.0
        %1257 = vmatpush2.msra.mxu0 0.0
        %1258 = vmatprep.subr.mxu0 0.0
        %1259 = vmatpush2.msra.mxu0 0.0
        %1260 = vmatprep.subr.mxu0 0.0
        %1261 = vmatpush2.msra.mxu0 0.0
        %1262 = vmatprep.subr.mxu0 0.0
        %1263 = vmatpush2.msra.mxu0 0.0
        %1264 = vmatprep.mubr.f32.mxu0 0.0
        %v1265 = vand.u32 %v908, 4294901760
        %v1266 = vsub.f32 %v908, %v1265
        %1267 = vmatmul.mubr.f32.gmra.mxu0 %v1266
        %v1268 = vpop.f32.mrf.mxu0
        %v1269 = vadd.f32 %v1159, %v1268
        %v1270 = vpop.f32.mrf.mxu0
        %1271 = vmatprep.mubr.f32.mxu0 0.0
        %v1272 = vand.u32 %v909, 4294901760
        %v1273 = vsub.f32 %v909, %v1272
        %1274 = vmatmul.mubr.f32.gmra.mxu0 %v1273
        %v1275 = vpop.f32.mrf.mxu0
        %v1276 = vadd.f32 %v1165, %v1275
        %v1277 = vpop.f32.mrf.mxu0
        %1278 = vdwg.mxu0
        %1279 = vmatprep.subr.mxu0 0.0
        %v1280 = vand.u32 %v223, 4294901760
        %1281 = vmatpush1.msra.mxu0 %v1280
        %1282 = vmatprep.subr.mxu0 0.0
        %v1283 = vand.u32 %v222, 4294901760
        %1284 = vmatpush1.msra.mxu0 %v1283
        %1285 = vmatprep.subr.mxu0 0.0
        %v1286 = vand.u32 %v221, 4294901760
        %1287 = vmatpush1.msra.mxu0 %v1286
        %1288 = vmatprep.subr.mxu0 0.0
        %v1289 = vand.u32 %v220, 4294901760
        %1290 = vmatpush1.msra.mxu0 %v1289
        %1291 = vmatprep.subr.mxu0 0.0
        %v1292 = vand.u32 %v219, 4294901760
        %1293 = vmatpush1.msra.mxu0 %v1292
        %1294 = vmatprep.subr.mxu0 0.0
        %v1295 = vand.u32 %v218, 4294901760
        %1296 = vmatpush1.msra.mxu0 %v1295
        %1297 = vmatprep.subr.mxu0 0.0
        %v1298 = vand.u32 %v217, 4294901760
        %1299 = vmatpush1.msra.mxu0 %v1298
        %1300 = vmatprep.subr.mxu0 0.0
        %v1301 = vand.u32 %v216, 4294901760
        %1302 = vmatpush1.msra.mxu0 %v1301
        %1303 = vmatprep.subr.mxu0 0.0
        %v1304 = vand.u32 %v215, 4294901760
        %1305 = vmatpush1.msra.mxu0 %v1304
        %1306 = vmatprep.subr.mxu0 0.0
        %v1307 = vand.u32 %v214, 4294901760
        %1308 = vmatpush1.msra.mxu0 %v1307
        %1309 = vmatprep.subr.mxu0 0.0
        %v1310 = vand.u32 %v213, 4294901760
        %1311 = vmatpush1.msra.mxu0 %v1310
        %1312 = vmatprep.subr.mxu0 0.0
        %v1313 = vand.u32 %v212, 4294901760
        %1314 = vmatpush1.msra.mxu0 %v1313
        %1315 = vmatprep.subr.mxu0 0.0
        %v1316 = vand.u32 %v211, 4294901760
        %1317 = vmatpush1.msra.mxu0 %v1316
        %1318 = vmatprep.subr.mxu0 0.0
        %v1319 = vand.u32 %v210, 4294901760
        %1320 = vmatpush1.msra.mxu0 %v1319
        %1321 = vmatprep.subr.mxu0 0.0
        %v1322 = vand.u32 %v209, 4294901760
        %1323 = vmatpush1.msra.mxu0 %v1322
        %1324 = vmatprep.subr.mxu0 0.0
        %v1325 = vand.u32 %v208, 4294901760
        %1326 = vmatpush1.msra.mxu0 %v1325
        %1327 = vmatprep.subr.mxu0 0.0
        %1328 = vmatpush2.msra.mxu0 0.0
        %1329 = vmatprep.subr.mxu0 0.0
        %1330 = vmatpush2.msra.mxu0 0.0
        %1331 = vmatprep.subr.mxu0 0.0
        %1332 = vmatpush2.msra.mxu0 0.0
        %1333 = vmatprep.subr.mxu0 0.0
        %1334 = vmatpush2.msra.mxu0 0.0
        %1335 = vmatprep.subr.mxu0 0.0
        %1336 = vmatpush2.msra.mxu0 0.0
        %1337 = vmatprep.subr.mxu0 0.0
        %1338 = vmatpush2.msra.mxu0 0.0
        %1339 = vmatprep.subr.mxu0 0.0
        %1340 = vmatpush2.msra.mxu0 0.0
        %1341 = vmatprep.subr.mxu0 0.0
        %1342 = vmatpush2.msra.mxu0 0.0
        %1343 = vmatprep.subr.mxu0 0.0
        %1344 = vmatpush2.msra.mxu0 0.0
        %1345 = vmatprep.subr.mxu0 0.0
        %1346 = vmatpush2.msra.mxu0 0.0
        %1347 = vmatprep.subr.mxu0 0.0
        %1348 = vmatpush2.msra.mxu0 0.0
        %1349 = vmatprep.subr.mxu0 0.0
        %1350 = vmatpush2.msra.mxu0 0.0
        %1351 = vmatprep.subr.mxu0 0.0
        %1352 = vmatpush2.msra.mxu0 0.0
        %1353 = vmatprep.subr.mxu0 0.0
        %1354 = vmatpush2.msra.mxu0 0.0
        %1355 = vmatprep.subr.mxu0 0.0
        %1356 = vmatpush2.msra.mxu0 0.0
        %1357 = vmatprep.subr.mxu0 0.0
        %1358 = vmatpush2.msra.mxu0 0.0
        %1359 = vmatprep.mubr.f32.mxu0 0.0
        %v1360 = vand.u32 %v908, 4294901760
        %v1361 = vsub.f32 %v908, %v1360
        %v1362 = vand.u32 %v1361, 4294901760
        %1363 = vmatmul.mubr.f32.gmra.mxu0 %v1362
        %v1364 = vpop.f32.mrf.mxu0
        %v1365 = vadd.f32 %v1269, %v1364
        %v1366 = vpop.f32.mrf.mxu0
        %1367 = vmatprep.mubr.f32.mxu0 0.0
        %v1368 = vand.u32 %v909, 4294901760
        %v1369 = vsub.f32 %v909, %v1368
        %v1370 = vand.u32 %v1369, 4294901760
        %1371 = vmatmul.mubr.f32.gmra.mxu0 %v1370
        %v1372 = vpop.f32.mrf.mxu0
        %v1373 = vadd.f32 %v1276, %v1372
        %v1374 = vpop.f32.mrf.mxu0
        %1375 = vdwg.mxu0
        %1376 = vmatprep.subr.mxu0 0.0
        %v1377 = vand.u32 %v223, 4294901760
        %v1378 = vsub.f32 %v223, %v1377
        %v1379 = vand.u32 %v1378, 4294901760
        %1380 = vmatpush1.msra.mxu0 %v1379
        %1381 = vmatprep.subr.mxu0 0.0
        %v1382 = vand.u32 %v222, 4294901760
        %v1383 = vsub.f32 %v222, %v1382
        %v1384 = vand.u32 %v1383, 4294901760
        %1385 = vmatpush1.msra.mxu0 %v1384
        %1386 = vmatprep.subr.mxu0 0.0
        %v1387 = vand.u32 %v221, 4294901760
        %v1388 = vsub.f32 %v221, %v1387
        %v1389 = vand.u32 %v1388, 4294901760
        %1390 = vmatpush1.msra.mxu0 %v1389
        %1391 = vmatprep.subr.mxu0 0.0
        %v1392 = vand.u32 %v220, 4294901760
        %v1393 = vsub.f32 %v220, %v1392
        %v1394 = vand.u32 %v1393, 4294901760
        %1395 = vmatpush1.msra.mxu0 %v1394
        %1396 = vmatprep.subr.mxu0 0.0
        %v1397 = vand.u32 %v219, 4294901760
        %v1398 = vsub.f32 %v219, %v1397
        %v1399 = vand.u32 %v1398, 4294901760
        %1400 = vmatpush1.msra.mxu0 %v1399
        %1401 = vmatprep.subr.mxu0 0.0
        %v1402 = vand.u32 %v218, 4294901760
        %v1403 = vsub.f32 %v218, %v1402
        %v1404 = vand.u32 %v1403, 4294901760
        %1405 = vmatpush1.msra.mxu0 %v1404
        %1406 = vmatprep.subr.mxu0 0.0
        %v1407 = vand.u32 %v217, 4294901760
        %v1408 = vsub.f32 %v217, %v1407
        %v1409 = vand.u32 %v1408, 4294901760
        %1410 = vmatpush1.msra.mxu0 %v1409
        %1411 = vmatprep.subr.mxu0 0.0
        %v1412 = vand.u32 %v216, 4294901760
        %v1413 = vsub.f32 %v216, %v1412
        %v1414 = vand.u32 %v1413, 4294901760
        %1415 = vmatpush1.msra.mxu0 %v1414
        %1416 = vmatprep.subr.mxu0 0.0
        %v1417 = vand.u32 %v215, 4294901760
        %v1418 = vsub.f32 %v215, %v1417
        %v1419 = vand.u32 %v1418, 4294901760
        %1420 = vmatpush1.msra.mxu0 %v1419
        %1421 = vmatprep.subr.mxu0 0.0
        %v1422 = vand.u32 %v214, 4294901760
        %v1423 = vsub.f32 %v214, %v1422
        %v1424 = vand.u32 %v1423, 4294901760
        %1425 = vmatpush1.msra.mxu0 %v1424
        %1426 = vmatprep.subr.mxu0 0.0
        %v1427 = vand.u32 %v213, 4294901760
        %v1428 = vsub.f32 %v213, %v1427
        %v1429 = vand.u32 %v1428, 4294901760
        %1430 = vmatpush1.msra.mxu0 %v1429
        %1431 = vmatprep.subr.mxu0 0.0
        %v1432 = vand.u32 %v212, 4294901760
        %v1433 = vsub.f32 %v212, %v1432
        %v1434 = vand.u32 %v1433, 4294901760
        %1435 = vmatpush1.msra.mxu0 %v1434
        %1436 = vmatprep.subr.mxu0 0.0
        %v1437 = vand.u32 %v211, 4294901760
        %v1438 = vsub.f32 %v211, %v1437
        %v1439 = vand.u32 %v1438, 4294901760
        %1440 = vmatpush1.msra.mxu0 %v1439
        %1441 = vmatprep.subr.mxu0 0.0
        %v1442 = vand.u32 %v210, 4294901760
        %v1443 = vsub.f32 %v210, %v1442
        %v1444 = vand.u32 %v1443, 4294901760
        %1445 = vmatpush1.msra.mxu0 %v1444
        %1446 = vmatprep.subr.mxu0 0.0
        %v1447 = vand.u32 %v209, 4294901760
        %v1448 = vsub.f32 %v209, %v1447
        %v1449 = vand.u32 %v1448, 4294901760
        %1450 = vmatpush1.msra.mxu0 %v1449
        %1451 = vmatprep.subr.mxu0 0.0
        %v1452 = vand.u32 %v208, 4294901760
        %v1453 = vsub.f32 %v208, %v1452
        %v1454 = vand.u32 %v1453, 4294901760
        %1455 = vmatpush1.msra.mxu0 %v1454
        %1456 = vmatprep.subr.mxu0 0.0
        %1457 = vmatpush2.msra.mxu0 0.0
        %1458 = vmatprep.subr.mxu0 0.0
        %1459 = vmatpush2.msra.mxu0 0.0
        %1460 = vmatprep.subr.mxu0 0.0
        %1461 = vmatpush2.msra.mxu0 0.0
        %1462 = vmatprep.subr.mxu0 0.0
        %1463 = vmatpush2.msra.mxu0 0.0
        %1464 = vmatprep.subr.mxu0 0.0
        %1465 = vmatpush2.msra.mxu0 0.0
        %1466 = vmatprep.subr.mxu0 0.0
        %1467 = vmatpush2.msra.mxu0 0.0
        %1468 = vmatprep.subr.mxu0 0.0
        %1469 = vmatpush2.msra.mxu0 0.0
        %1470 = vmatprep.subr.mxu0 0.0
        %1471 = vmatpush2.msra.mxu0 0.0
        %1472 = vmatprep.subr.mxu0 0.0
        %1473 = vmatpush2.msra.mxu0 0.0
        %1474 = vmatprep.subr.mxu0 0.0
        %1475 = vmatpush2.msra.mxu0 0.0
        %1476 = vmatprep.subr.mxu0 0.0
        %1477 = vmatpush2.msra.mxu0 0.0
        %1478 = vmatprep.subr.mxu0 0.0
        %1479 = vmatpush2.msra.mxu0 0.0
        %1480 = vmatprep.subr.mxu0 0.0
        %1481 = vmatpush2.msra.mxu0 0.0
        %1482 = vmatprep.subr.mxu0 0.0
        %1483 = vmatpush2.msra.mxu0 0.0
        %1484 = vmatprep.subr.mxu0 0.0
        %1485 = vmatpush2.msra.mxu0 0.0
        %1486 = vmatprep.subr.mxu0 0.0
        %1487 = vmatpush2.msra.mxu0 0.0
        %1488 = vmatprep.mubr.f32.mxu0 0.0
        %v1489 = vand.u32 %v908, 4294901760
        %1490 = vmatmul.mubr.f32.gmra.mxu0 %v1489
        %v1491 = vpop.f32.mrf.mxu0
        %v1492 = vadd.f32 %v1365, %v1491
        %v1493 = vpop.f32.mrf.mxu0
        %1494 = vmatprep.mubr.f32.mxu0 0.0
        %v1495 = vand.u32 %v909, 4294901760
        %1496 = vmatmul.mubr.f32.gmra.mxu0 %v1495
        %v1497 = vpop.f32.mrf.mxu0
        %v1498 = vadd.f32 %v1373, %v1497
        %v1499 = vpop.f32.mrf.mxu0
        %1500 = vdwg.mxu0
        %1501 = vmatprep.subr.mxu0 0.0
        %v1502 = vand.u32 %v223, 4294901760
        %1503 = vmatpush1.msra.mxu0 %v1502
        %1504 = vmatprep.subr.mxu0 0.0
        %v1505 = vand.u32 %v222, 4294901760
        %1506 = vmatpush1.msra.mxu0 %v1505
        %1507 = vmatprep.subr.mxu0 0.0
        %v1508 = vand.u32 %v221, 4294901760
        %1509 = vmatpush1.msra.mxu0 %v1508
        %1510 = vmatprep.subr.mxu0 0.0
        %v1511 = vand.u32 %v220, 4294901760
        %1512 = vmatpush1.msra.mxu0 %v1511
        %1513 = vmatprep.subr.mxu0 0.0
        %v1514 = vand.u32 %v219, 4294901760
        %1515 = vmatpush1.msra.mxu0 %v1514
        %1516 = vmatprep.subr.mxu0 0.0
        %v1517 = vand.u32 %v218, 4294901760
        %1518 = vmatpush1.msra.mxu0 %v1517
        %1519 = vmatprep.subr.mxu0 0.0
        %v1520 = vand.u32 %v217, 4294901760
        %1521 = vmatpush1.msra.mxu0 %v1520
        %1522 = vmatprep.subr.mxu0 0.0
        %v1523 = vand.u32 %v216, 4294901760
        %1524 = vmatpush1.msra.mxu0 %v1523
        %1525 = vmatprep.subr.mxu0 0.0
        %v1526 = vand.u32 %v215, 4294901760
        %1527 = vmatpush1.msra.mxu0 %v1526
        %1528 = vmatprep.subr.mxu0 0.0
        %v1529 = vand.u32 %v214, 4294901760
        %1530 = vmatpush1.msra.mxu0 %v1529
        %1531 = vmatprep.subr.mxu0 0.0
        %v1532 = vand.u32 %v213, 4294901760
        %1533 = vmatpush1.msra.mxu0 %v1532
        %1534 = vmatprep.subr.mxu0 0.0
        %v1535 = vand.u32 %v212, 4294901760
        %1536 = vmatpush1.msra.mxu0 %v1535
        %1537 = vmatprep.subr.mxu0 0.0
        %v1538 = vand.u32 %v211, 4294901760
        %1539 = vmatpush1.msra.mxu0 %v1538
        %1540 = vmatprep.subr.mxu0 0.0
        %v1541 = vand.u32 %v210, 4294901760
        %1542 = vmatpush1.msra.mxu0 %v1541
        %1543 = vmatprep.subr.mxu0 0.0
        %v1544 = vand.u32 %v209, 4294901760
        %1545 = vmatpush1.msra.mxu0 %v1544
        %1546 = vmatprep.subr.mxu0 0.0
        %v1547 = vand.u32 %v208, 4294901760
        %1548 = vmatpush1.msra.mxu0 %v1547
        %1549 = vmatprep.subr.mxu0 0.0
        %1550 = vmatpush2.msra.mxu0 0.0
        %1551 = vmatprep.subr.mxu0 0.0
        %1552 = vmatpush2.msra.mxu0 0.0
        %1553 = vmatprep.subr.mxu0 0.0
        %1554 = vmatpush2.msra.mxu0 0.0
        %1555 = vmatprep.subr.mxu0 0.0
        %1556 = vmatpush2.msra.mxu0 0.0
        %1557 = vmatprep.subr.mxu0 0.0
        %1558 = vmatpush2.msra.mxu0 0.0
        %1559 = vmatprep.subr.mxu0 0.0
        %1560 = vmatpush2.msra.mxu0 0.0
        %1561 = vmatprep.subr.mxu0 0.0
        %1562 = vmatpush2.msra.mxu0 0.0
        %1563 = vmatprep.subr.mxu0 0.0
        %1564 = vmatpush2.msra.mxu0 0.0
        %1565 = vmatprep.subr.mxu0 0.0
        %1566 = vmatpush2.msra.mxu0 0.0
        %1567 = vmatprep.subr.mxu0 0.0
        %1568 = vmatpush2.msra.mxu0 0.0
        %1569 = vmatprep.subr.mxu0 0.0
        %1570 = vmatpush2.msra.mxu0 0.0
        %1571 = vmatprep.subr.mxu0 0.0
        %1572 = vmatpush2.msra.mxu0 0.0
        %1573 = vmatprep.subr.mxu0 0.0
        %1574 = vmatpush2.msra.mxu0 0.0
        %1575 = vmatprep.subr.mxu0 0.0
        %1576 = vmatpush2.msra.mxu0 0.0
        %1577 = vmatprep.subr.mxu0 0.0
        %1578 = vmatpush2.msra.mxu0 0.0
        %1579 = vmatprep.subr.mxu0 0.0
        %1580 = vmatpush2.msra.mxu0 0.0
        %1581 = vmatprep.mubr.f32.mxu0 0.0
        %v1582 = vand.u32 %v908, 4294901760
        %1583 = vmatmul.mubr.f32.gmra.mxu0 %v1582
        %v1584 = vpop.f32.mrf.mxu0
        %v1585 = vadd.f32 %v1492, %v1584
        %v1586 = vpop.f32.mrf.mxu0
        %1587 = vmatprep.mubr.f32.mxu0 0.0
        %v1588 = vand.u32 %v909, 4294901760
        %1589 = vmatmul.mubr.f32.gmra.mxu0 %v1588
        %v1590 = vpop.f32.mrf.mxu0
        %v1591 = vadd.f32 %v1498, %v1590
        %v1592 = vpop.f32.mrf.mxu0
        %1593 = vdwg.mxu0
        %v1594 = vmul.f32 %v899, %v899
        %v1595 = vmul.f32 %v905, %v905
        %v1596 = vsub.f32 %v1585, %v1594
        %v1597 = vsub.f32 %v1591, %v1595
        %v1598 = vmax.f32 %v1596, 0.0
        %v1599 = vmax.f32 %v1597, 0.0
        %v1600 = vadd.f32 %v1598, 1e-05
        %v1601 = vadd.f32 %v1599, 1e-05
        %v1602 = vrsqrt.pop %v1600
        %v1603 = vrsqrt.pop %v1601
        %v1604 = vld [vmem:[%s2] sm:$0x1]
        %v1605 = vld [vmem:[%s2 + $0x1] sm:$0x1]
        %v1606 = vsub.f32 %v206, %v899
        %v1607 = vsub.f32 %v207, %v905
        %v1608 = vmul.f32 %v1606, %v1602
        %v1609 = vmul.f32 %v1607, %v1603
        %v1610 = vlaneseq
        %v1611 = vshrl.u32 %v1610, 7
        %v1612 = vsub.s32 0, %v1611
        %v1613 = vrot.slane %v1604, %v1612
        %v1614 = vmul.f32 %v1608, %v1613
        %v1615 = vmul.f32 %v1609, %v1613
        %v1616 = vlaneseq
        %v1617 = vshrl.u32 %v1616, 7
        %v1618 = vsub.s32 0, %v1617
        %v1619 = vrot.slane %v1605, %v1618
        %v1620 = vadd.f32 %v1614, %v1619
        %v1621 = vadd.f32 %v1615, %v1619
        %1622 = vst [vmem:[%s203] sm:$0xff] %v1620
        %1623 = vst [vmem:[%s203 + $0x8] sm:$0xff] %v1621
        %s1624 = sand.u32 %s97, 1
        %s1625 = scalar_lea.sflag [#allocation4], %s1624
        %s1626 = sand.u32 %s97, 1
        %s1627 = smul.addr %s1626, 16
        %s1628 = scalar_lea.vmem [#allocation7], %s1627
        // Predicated region
        $region41: #{tpu_custom_call.1} parent=31 // pred_check
          %p1629 = pneg %p107
        $region42: #{tpu_custom_call.1} parent=31 // pred_check_branch
          %1631 = sbr.rel (%p1629) target = $region44
        $region43: #{tpu_custom_call.1} parent=31 // pred_region
          %s1632 = smul.u32 2, %s21
          %s1634 = ssub.s32 256, 256
          %1635 = vsyncadd %s1625, %s1634
          %s1636 = smul.addr %s1632, 128
          %s1637 = scalar_lea.hbm %s3, %s1636
          %s1638 = sshll.u32 %s1628, 4
          %s1639 = int_to_ptr.vmem [resolvable:$true] %s1638
          %1644 = dma.vmem_to_hbm [thread:$0]  %s1639, 256, %s1637, %s1625, 128, 128, 8
        $region44: #{tpu_custom_call.1} parent=31 // pred_fallthru
          _
      $region32: #{tpu_custom_call.1} parent=5 // pred_fallthru
        _
      %p1645 = scmp.le.s32.totalorder 2, %s16
      // Predicated region
      $region45: #{tpu_custom_call.1} parent=5 // pred_check
        %p1646 = pneg %p1645
      $region46: #{tpu_custom_call.1} parent=5 // pred_check_branch
        %1648 = sbr.rel (%p1646) target = $region48
      $region47: #{tpu_custom_call.1} parent=5 // pred_region
        %s1649 = ssub.s32 %s16, 2
        // Predicated region
        $region49: #{tpu_custom_call.1} parent=47 // pred_check
          %p1650 = pneg %p113
        $region50: #{tpu_custom_call.1} parent=47 // pred_check_branch
          %1652 = sbr.rel (%p1650) target = $region52
        $region51: #{tpu_custom_call.1} parent=47 // pred_region
          %s1653 = sand.u32 %s98, 1
          %s1654 = scalar_lea.sflag [#allocation4], %s1653
          %s1655 = sand.u32 %s98, 1
          %s1656 = smul.addr %s1655, 16
          %s1657 = scalar_lea.vmem [#allocation7], %s1656
          %1658 = dma.done %s1654, 256
        $region52: #{tpu_custom_call.1} parent=47 // pred_fallthru
          _
      $region48: #{tpu_custom_call.1} parent=5 // pred_fallthru
        _
    $region6: #{tpu_custom_call.1} parent=1 // loop_footer
      %s20 = sadd.s32 1, %s16
    $region7: #{tpu_custom_call.1} parent=1 // loop_footer_branch
      %15 = sbr.rel target = $region3
    $region8: #{tpu_custom_call.1} parent=1 // loop_exit
      _
    %1659 = vsyncpa [#allocation3], 1
    %s1660 = scalar_lea.sflag [#allocation3], 1
    %1661 = vsyncpa %s1660, 1
    %1662 = vsyncpa [#allocation6], 1
    %1663 = vsyncpa [#allocation4], 1
    %s1664 = scalar_lea.sflag [#allocation4], 1
    %1665 = vsyncpa %s1664, 1

</llo_original>
